<compile_context>
chip_gen: v7x
topology: tpu7x:2x2x1
jax: 0.10.0
libtpu: 0.0.40
codegen_flags: <defaults>
</compile_context>

<pallas_src>
import functools
import math

import jax
import jax.numpy as jnp
from jax import lax
from jax.experimental import pallas as pl
from jax.experimental.pallas import tpu as pltpu


def _transformer_kernel(x_ref, wq_ref, wk_ref, wv_ref, wo_ref, bmha_ref,
                        w1_ref, b1_ref, w2_ref, b2_ref, out_ref,
                        *, n_layers, n_heads):
    """All layers + all heads fused; one batch element per grid step."""
    ce = x_ref[0]                                   # (S, D) f32
    S = ce.shape[0]

    # Key-position-0 mask, hoisted out of the layer/head loops.  Column 0 is forced
    # to a huge negative value before max and exp (exp -> exactly 0, no inf math).
    col = lax.broadcasted_iota(jnp.int32, (S, S), 1)
    key_valid = col > 0
    neg_big = jnp.float32(-1e30)

    for l in range(n_layers):
        mha = jnp.zeros_like(ce)                    # (S, D) head accumulator
        for h in range(n_heads):
            idx = l * n_heads + h
            # Pre-transposed per-head weights -> plain contractions, no .T in-kernel.
            # 1/sqrt(dk) is already folded into Wq on the host.
            qh = jnp.dot(ce, wq_ref[idx], preferred_element_type=jnp.float32)  # (S, H)
            kh = jnp.dot(ce, wk_ref[idx], preferred_element_type=jnp.float32)  # (S, H)
            vh = jnp.dot(ce, wv_ref[idx], preferred_element_type=jnp.float32)  # (S, H)
            # Q @ K^T without an explicit transpose: contract the last dims.
            s = lax.dot_general(qh, kh, (((1,), (1,)), ((), ())),
                                preferred_element_type=jnp.float32)            # (S, S)
            # Masked softmax (key 0 excluded from the max AND the exp).
            s = jnp.where(key_valid, s, neg_big)
            m = jnp.max(s, axis=-1, keepdims=True)
            p = jnp.exp(s - m)                      # masked column underflows to 0
            denom = jnp.sum(p, axis=-1, keepdims=True)
            att = p * pl.reciprocal(denom, approx=False)
            # Re-associated value path: att @ (ce @ Wv^T), then accumulate the
            # per-head output projection directly into mha (no head concat).
            av = jnp.dot(att, vh, preferred_element_type=jnp.float32)          # (S, H)
            mha = mha + jnp.dot(av, wo_ref[idx], preferred_element_type=jnp.float32)

        # Folded (bv @ Wo^T + bo) biases; MHA residual + TLayer residual => 2*ce.
        y = 2.0 * ce + mha + bmha_ref[l]            # (S, D)

        last = (l == n_layers - 1)
        if last:
            # The wrapper only consumes ce[:, 0, :]; run the final MLP on row 0 only.
            y = y[0:1, :]                           # (1, D)
        h1 = jnp.maximum(
            jnp.dot(y, w1_ref[l], preferred_element_type=jnp.float32) + b1_ref[l], 0.0)
        o = jnp.dot(h1, w2_ref[l], preferred_element_type=jnp.float32) + b2_ref[l]
        if last:
            out_ref[0] = o.astype(out_ref.dtype)    # (1, O) row-0 store
        else:
            ce = o                                  # stays resident in vregs/VMEM


def transformer_spec_forward(x, X, layer_params):
    """MyTransformerSpec.forward(x, X) as one fused pallas_call."""
    ce = jnp.concatenate([x, X], axis=1).astype(jnp.float32)
    B, S, D = ce.shape
    L = len(layer_params)
    nH, H, _ = layer_params[0][0].shape
    F = layer_params[0][6].shape[0]
    O = layer_params[0][8].shape[0]

    # Weight stacking requires identical per-layer dims; chaining requires
    # d_out == d_model for all but the last layer (true for this module config).
    for i, (wq, wk, wv, bv, wo, bo, w1, b1, w2, b2) in enumerate(layer_params):
        assert wq.shape == (nH, H, D) and wk.shape == (nH, H, D)
        assert wv.shape == (nH, H, D) and wo.shape == (nH, D, H)
        assert w1.shape == (F, D) and w2.shape == (O, F)
        if i < L - 1:
            assert w2.shape[0] == D, "layer chaining needs d_out == d_model"

    # Host-side weight repacking (once, outside the kernel).
    inv_sqrt_dk = 1.0 / math.sqrt(H)
    wqT, wkT, wvT, woT = [], [], [], []
    bmha, w1T, b1r, w2T, b2r = [], [], [], [], []
    for (wq, wk, wv, bv, wo, bo, w1, b1, w2, b2) in layer_params:
        wqT.append(jnp.transpose(wq, (0, 2, 1)) * inv_sqrt_dk)   # (nH, D, H), scale folded
        wkT.append(jnp.transpose(wk, (0, 2, 1)))                 # (nH, D, H)
        wvT.append(jnp.transpose(wv, (0, 2, 1)))                 # (nH, D, H)
        woT.append(jnp.transpose(wo, (0, 2, 1)))                 # (nH, H, D)
        # Fold V and O biases of all heads: sum_h (bv_h @ Wo_h^T + bo_h).
        bmha.append((jnp.einsum('nh,ndh->d', bv, wo) + jnp.sum(bo, axis=0)).reshape(1, D))
        w1T.append(w1.T)                                         # (D, F)
        b1r.append(b1.reshape(1, F))
        w2T.append(w2.T)                                         # (F, O)
        b2r.append(b2.reshape(1, O))

    wqT = jnp.concatenate(wqT, axis=0)   # (L*nH, D, H)
    wkT = jnp.concatenate(wkT, axis=0)   # (L*nH, D, H)
    wvT = jnp.concatenate(wvT, axis=0)   # (L*nH, D, H)
    woT = jnp.concatenate(woT, axis=0)   # (L*nH, H, D)
    bmha = jnp.stack(bmha, axis=0)       # (L, 1, D)
    w1T = jnp.stack(w1T, axis=0)         # (L, D, F)
    b1r = jnp.stack(b1r, axis=0)         # (L, 1, F)
    w2T = jnp.stack(w2T, axis=0)         # (L, F, O)
    b2r = jnp.stack(b2r, axis=0)         # (L, 1, O)

    kernel = functools.partial(_transformer_kernel, n_layers=L, n_heads=nH)

    out = pl.pallas_call(
        kernel,
        out_shape=jax.ShapeDtypeStruct((B, 1, O), jnp.float32),
        grid_spec=pltpu.PrefetchScalarGridSpec(
            num_scalar_prefetch=0,
            grid=(B,),
            in_specs=[
                pl.BlockSpec((1, S, D), lambda b: (b, 0, 0)),          # ce slab
                pl.BlockSpec((L * nH, D, H), lambda b: (0, 0, 0)),     # Wq^T (scaled)
                pl.BlockSpec((L * nH, D, H), lambda b: (0, 0, 0)),     # Wk^T
                pl.BlockSpec((L * nH, D, H), lambda b: (0, 0, 0)),     # Wv^T
                pl.BlockSpec((L * nH, H, D), lambda b: (0, 0, 0)),     # Wo^T
                pl.BlockSpec((L, 1, D), lambda b: (0, 0, 0)),          # folded MHA bias
                pl.BlockSpec((L, D, F), lambda b: (0, 0, 0)),          # MLP W1^T
                pl.BlockSpec((L, 1, F), lambda b: (0, 0, 0)),          # MLP b1
                pl.BlockSpec((L, F, O), lambda b: (0, 0, 0)),          # MLP W2^T
                pl.BlockSpec((L, 1, O), lambda b: (0, 0, 0)),          # MLP b2
            ],
            out_specs=pl.BlockSpec((1, 1, O), lambda b: (b, 0, 0)),    # row-0 only
        ),
        compiler_params=pltpu.CompilerParams(
            dimension_semantics=("parallel",)),
    )(ce, wqT, wkT, wvT, woT, bmha, w1T, b1r, w2T, b2r)
    return out[:, 0, :]                              # (B, O) == ce[:, 0, :]


def transformer_reference(x, X, layer_params):
    """Pure-JAX reference mirroring the PyTorch module exactly."""
    ce = jnp.concatenate([x, X], axis=1).astype(jnp.float32)
    for (wq, wk, wv, bv, wo, bo, w1, b1, w2, b2) in layer_params:
        nH, H, _ = wq.shape
        mha_out = jnp.zeros_like(ce)
        for h in range(nH):
            q = ce @ wq[h].T
            k = ce @ wk[h].T
            s = jnp.einsum('bqh,bkh->bqk', q, k) / math.sqrt(H)
            s = s.at[:, :, 0].set(-jnp.inf)
            att = jax.nn.softmax(s, axis=-1)
            att_out = jnp.einsum('bqk,bkd->bqd', att, ce)
            vv = att_out @ wv[h].T + bv[h]
            mha_out = mha_out + (vv @ wo[h].T + bo[h])
        attn = ce + mha_out            # MHA: src + sum(heads)
        n1 = ce + attn                 # TLayer residual
        h1 = jnp.maximum(n1 @ w1.T + b1, 0.0)
        ce = h1 @ w2.T + b2
    return ce[:, 0, :]


if __name__ == "__main__":
    # Shapes consistent with
    # MyTransformerSpec(n_heads=2, layers=2, dimFeedForward=[[4,8,4],[4,8,4]], hid_dim=2)
    B, S1, S2 = 2, 4, 4
    D, HID, N_HEADS, DIMFF, D_OUT = 4, 2, 2, 8, 4
    LAYERS = 2

    key = jax.random.PRNGKey(0)
    keys = jax.random.split(key, 2 + LAYERS * 10)
    x = jax.random.normal(keys[0], (B, S1, D), dtype=jnp.float32)
    X = jax.random.normal(keys[1], (B, S2, D), dtype=jnp.float32)

    def uni(k, shape, fan_in):
        bound = 1.0 / math.sqrt(fan_in)
        return jax.random.uniform(k, shape, minval=-bound, maxval=bound, dtype=jnp.float32)

    layer_params = []
    ki = 2
    for _ in range(LAYERS):
        wq = uni(keys[ki + 0], (N_HEADS, HID, D), D)       # nn.Linear(D, HID), no bias
        wk = uni(keys[ki + 1], (N_HEADS, HID, D), D)
        wv = uni(keys[ki + 2], (N_HEADS, HID, D), D)
        bv = uni(keys[ki + 3], (N_HEADS, HID), D)
        wo = uni(keys[ki + 4], (N_HEADS, D, HID), HID)     # nn.Linear(HID, D)
        bo = uni(keys[ki + 5], (N_HEADS, D), HID)
        w1 = uni(keys[ki + 6], (DIMFF, D), D)              # MLP Linear(D, DIMFF)
        b1 = uni(keys[ki + 7], (DIMFF,), D)
        w2 = uni(keys[ki + 8], (D_OUT, DIMFF), DIMFF)      # MLP Linear(DIMFF, D_OUT)
        b2 = uni(keys[ki + 9], (D_OUT,), DIMFF)
        layer_params.append((wq, wk, wv, bv, wo, bo, w1, b1, w2, b2))
        ki += 10

    out = transformer_spec_forward(x, X, layer_params)
    jax.block_until_ready(out)

    ref = transformer_reference(x, X, layer_params)
    assert out.shape == (B, D_OUT)
    assert jnp.allclose(out, ref, atol=1e-4, rtol=1e-4), (
        f"Pallas output mismatch vs reference; max abs err = "
        f"{jnp.max(jnp.abs(out - ref))}")

    print("KERNEL_OK")
</pallas_src>

<mosaic_0001>
module attributes {stable_mosaic.version = 11 : i64} {
  func.func @_transformer_kernel(%arg0: i32, %arg1: memref<1x8x4xf32, #tpu.memory_space<vmem>>, %arg2: memref<4x4x2xf32, #tpu.memory_space<vmem>>, %arg3: memref<4x4x2xf32, #tpu.memory_space<vmem>>, %arg4: memref<4x4x2xf32, #tpu.memory_space<vmem>>, %arg5: memref<4x2x4xf32, #tpu.memory_space<vmem>>, %arg6: memref<2x1x4xf32, #tpu.memory_space<vmem>>, %arg7: memref<2x4x8xf32, #tpu.memory_space<vmem>>, %arg8: memref<2x1x8xf32, #tpu.memory_space<vmem>>, %arg9: memref<2x8x4xf32, #tpu.memory_space<vmem>>, %arg10: memref<2x1x4xf32, #tpu.memory_space<vmem>>, %arg11: memref<1x1x4xf32, #tpu.memory_space<vmem>>) attributes {dimension_semantics = [#tpu.dimension_semantics<parallel>], iteration_bounds = array<i64: 2>, scalar_prefetch = 0 : i64, scratch_operands = 0 : i64, tpu.core_type = #tpu.core_type<tc>, window_params = [{transform_indices = @transform_0, window_bounds = array<i64: 1, 8, 4>}, {pipeline_mode = #tpu.pipeline_mode<synchronous>, transform_indices = @transform_1, window_bounds = array<i64: 4, 4, 2>}, {pipeline_mode = #tpu.pipeline_mode<synchronous>, transform_indices = @transform_2, window_bounds = array<i64: 4, 4, 2>}, {pipeline_mode = #tpu.pipeline_mode<synchronous>, transform_indices = @transform_3, window_bounds = array<i64: 4, 4, 2>}, {pipeline_mode = #tpu.pipeline_mode<synchronous>, transform_indices = @transform_4, window_bounds = array<i64: 4, 2, 4>}, {pipeline_mode = #tpu.pipeline_mode<synchronous>, transform_indices = @transform_5, window_bounds = array<i64: 2, 1, 4>}, {pipeline_mode = #tpu.pipeline_mode<synchronous>, transform_indices = @transform_6, window_bounds = array<i64: 2, 4, 8>}, {pipeline_mode = #tpu.pipeline_mode<synchronous>, transform_indices = @transform_7, window_bounds = array<i64: 2, 1, 8>}, {pipeline_mode = #tpu.pipeline_mode<synchronous>, transform_indices = @transform_8, window_bounds = array<i64: 2, 8, 4>}, {pipeline_mode = #tpu.pipeline_mode<synchronous>, transform_indices = @transform_9, window_bounds = array<i64: 2, 1, 4>}, {transform_indices = @transform_10, window_bounds = array<i64: 1, 1, 4>}]} {
    %c0 = arith.constant 0 : index
    %c0_0 = arith.constant 0 : index
    %c0_1 = arith.constant 0 : index
    %0 = vector.load %arg1[%c0, %c0_0, %c0_1] : memref<1x8x4xf32, #tpu.memory_space<vmem>>, vector<1x8x4xf32>
    %1 = vector.shape_cast %0 : vector<1x8x4xf32> to vector<8x4xf32>
    %2 = tpu.iota {dimensions = array<i32: 1>} : vector<8x8xi32>
    %c0_i32 = arith.constant 0 : i32
    %3 = vector.broadcast %c0_i32 : i32 to vector<8x8xi32>
    %4 = arith.cmpi sgt, %2, %3 : vector<8x8xi32>
    %cst = arith.constant 0.000000e+00 : f32
    %5 = vector.broadcast %cst : f32 to vector<8x4xf32>
    %c0_2 = arith.constant 0 : index
    %c0_3 = arith.constant 0 : index
    %c0_4 = arith.constant 0 : index
    %6 = vector.load %arg2[%c0_2, %c0_3, %c0_4] : memref<4x4x2xf32, #tpu.memory_space<vmem>>, vector<1x4x2xf32>
    %7 = vector.shape_cast %6 : vector<1x4x2xf32> to vector<4x2xf32>
    %cst_5 = arith.constant dense<0.000000e+00> : vector<8x2xf32>
    %8 = tpu.matmul %1, %7, %cst_5 {dimension_numbers = #tpu.dot_dimension_numbers<[1], [0], [0], [1], [0, 0, 1, 1], [], []>} : vector<8x4xf32>, vector<4x2xf32>, vector<8x2xf32> -> vector<8x2xf32>
    %c0_6 = arith.constant 0 : index
    %c0_7 = arith.constant 0 : index
    %c0_8 = arith.constant 0 : index
    %9 = vector.load %arg3[%c0_6, %c0_7, %c0_8] : memref<4x4x2xf32, #tpu.memory_space<vmem>>, vector<1x4x2xf32>
    %10 = vector.shape_cast %9 : vector<1x4x2xf32> to vector<4x2xf32>
    %cst_9 = arith.constant dense<0.000000e+00> : vector<8x2xf32>
    %11 = tpu.matmul %1, %10, %cst_9 {dimension_numbers = #tpu.dot_dimension_numbers<[1], [0], [0], [1], [0, 0, 1, 1], [], []>} : vector<8x4xf32>, vector<4x2xf32>, vector<8x2xf32> -> vector<8x2xf32>
    %c0_10 = arith.constant 0 : index
    %c0_11 = arith.constant 0 : index
    %c0_12 = arith.constant 0 : index
    %12 = vector.load %arg4[%c0_10, %c0_11, %c0_12] : memref<4x4x2xf32, #tpu.memory_space<vmem>>, vector<1x4x2xf32>
    %13 = vector.shape_cast %12 : vector<1x4x2xf32> to vector<4x2xf32>
    %cst_13 = arith.constant dense<0.000000e+00> : vector<8x2xf32>
    %14 = tpu.matmul %1, %13, %cst_13 {dimension_numbers = #tpu.dot_dimension_numbers<[1], [0], [0], [1], [0, 0, 1, 1], [], []>} : vector<8x4xf32>, vector<4x2xf32>, vector<8x2xf32> -> vector<8x2xf32>
    %cst_14 = arith.constant dense<0.000000e+00> : vector<8x8xf32>
    %15 = tpu.matmul %8, %11, %cst_14 {dimension_numbers = #tpu.dot_dimension_numbers<[1], [1], [0], [0], [0, 0, 1, 0], [], []>} : vector<8x2xf32>, vector<8x2xf32>, vector<8x8xf32> -> vector<8x8xf32>
    %cst_15 = arith.constant -1.000000e+30 : f32
    %16 = vector.broadcast %cst_15 : f32 to vector<8x8xf32>
    %17 = arith.select %4, %15, %16 : vector<8x8xi1>, vector<8x8xf32>
    %cst_16 = arith.constant dense<0xFF800000> : vector<8xf32>
    %18 = vector.multi_reduction <maximumf>, %17, %cst_16 [1] : vector<8x8xf32> to vector<8xf32>
    %19 = vector.shape_cast %18 : vector<8xf32> to vector<8x1xf32>
    %20 = vector.broadcast %19 : vector<8x1xf32> to vector<8x8xf32>
    %21 = arith.subf %17, %20 : vector<8x8xf32>
    %22 = math.exp %21 : vector<8x8xf32>
    %cst_17 = arith.constant dense<0.000000e+00> : vector<8xf32>
    %23 = vector.multi_reduction <add>, %22, %cst_17 [1] : vector<8x8xf32> to vector<8xf32>
    %24 = vector.shape_cast %23 : vector<8xf32> to vector<8x1xf32>
    %25 = tpu.reciprocal %24 : vector<8x1xf32> -> vector<8x1xf32>
    %26 = vector.broadcast %25 : vector<8x1xf32> to vector<8x8xf32>
    %27 = arith.mulf %22, %26 : vector<8x8xf32>
    %cst_18 = arith.constant dense<0.000000e+00> : vector<8x2xf32>
    %28 = tpu.matmul %27, %14, %cst_18 {dimension_numbers = #tpu.dot_dimension_numbers<[1], [0], [0], [1], [0, 0, 1, 1], [], []>} : vector<8x8xf32>, vector<8x2xf32>, vector<8x2xf32> -> vector<8x2xf32>
    %c0_19 = arith.constant 0 : index
    %c0_20 = arith.constant 0 : index
    %c0_21 = arith.constant 0 : index
    %29 = vector.load %arg5[%c0_19, %c0_20, %c0_21] : memref<4x2x4xf32, #tpu.memory_space<vmem>>, vector<1x2x4xf32>
    %30 = vector.shape_cast %29 : vector<1x2x4xf32> to vector<2x4xf32>
    %cst_22 = arith.constant dense<0.000000e+00> : vector<8x4xf32>
    %31 = tpu.matmul %28, %30, %cst_22 {dimension_numbers = #tpu.dot_dimension_numbers<[1], [0], [0], [1], [0, 0, 1, 1], [], []>} : vector<8x2xf32>, vector<2x4xf32>, vector<8x4xf32> -> vector<8x4xf32>
    %32 = arith.addf %5, %31 : vector<8x4xf32>
    %c1 = arith.constant 1 : index
    %c0_23 = arith.constant 0 : index
    %c0_24 = arith.constant 0 : index
    %33 = vector.load %arg2[%c1, %c0_23, %c0_24] : memref<4x4x2xf32, #tpu.memory_space<vmem>>, vector<1x4x2xf32>
    %34 = vector.shape_cast %33 : vector<1x4x2xf32> to vector<4x2xf32>
    %cst_25 = arith.constant dense<0.000000e+00> : vector<8x2xf32>
    %35 = tpu.matmul %1, %34, %cst_25 {dimension_numbers = #tpu.dot_dimension_numbers<[1], [0], [0], [1], [0, 0, 1, 1], [], []>} : vector<8x4xf32>, vector<4x2xf32>, vector<8x2xf32> -> vector<8x2xf32>
    %c1_26 = arith.constant 1 : index
    %c0_27 = arith.constant 0 : index
    %c0_28 = arith.constant 0 : index
    %36 = vector.load %arg3[%c1_26, %c0_27, %c0_28] : memref<4x4x2xf32, #tpu.memory_space<vmem>>, vector<1x4x2xf32>
    %37 = vector.shape_cast %36 : vector<1x4x2xf32> to vector<4x2xf32>
    %cst_29 = arith.constant dense<0.000000e+00> : vector<8x2xf32>
    %38 = tpu.matmul %1, %37, %cst_29 {dimension_numbers = #tpu.dot_dimension_numbers<[1], [0], [0], [1], [0, 0, 1, 1], [], []>} : vector<8x4xf32>, vector<4x2xf32>, vector<8x2xf32> -> vector<8x2xf32>
    %c1_30 = arith.constant 1 : index
    %c0_31 = arith.constant 0 : index
    %c0_32 = arith.constant 0 : index
    %39 = vector.load %arg4[%c1_30, %c0_31, %c0_32] : memref<4x4x2xf32, #tpu.memory_space<vmem>>, vector<1x4x2xf32>
    %40 = vector.shape_cast %39 : vector<1x4x2xf32> to vector<4x2xf32>
    %cst_33 = arith.constant dense<0.000000e+00> : vector<8x2xf32>
    %41 = tpu.matmul %1, %40, %cst_33 {dimension_numbers = #tpu.dot_dimension_numbers<[1], [0], [0], [1], [0, 0, 1, 1], [], []>} : vector<8x4xf32>, vector<4x2xf32>, vector<8x2xf32> -> vector<8x2xf32>
    %cst_34 = arith.constant dense<0.000000e+00> : vector<8x8xf32>
    %42 = tpu.matmul %35, %38, %cst_34 {dimension_numbers = #tpu.dot_dimension_numbers<[1], [1], [0], [0], [0, 0, 1, 0], [], []>} : vector<8x2xf32>, vector<8x2xf32>, vector<8x8xf32> -> vector<8x8xf32>
    %cst_35 = arith.constant -1.000000e+30 : f32
    %43 = vector.broadcast %cst_35 : f32 to vector<8x8xf32>
    %44 = arith.select %4, %42, %43 : vector<8x8xi1>, vector<8x8xf32>
    %cst_36 = arith.constant dense<0xFF800000> : vector<8xf32>
    %45 = vector.multi_reduction <maximumf>, %44, %cst_36 [1] : vector<8x8xf32> to vector<8xf32>
    %46 = vector.shape_cast %45 : vector<8xf32> to vector<8x1xf32>
    %47 = vector.broadcast %46 : vector<8x1xf32> to vector<8x8xf32>
    %48 = arith.subf %44, %47 : vector<8x8xf32>
    %49 = math.exp %48 : vector<8x8xf32>
    %cst_37 = arith.constant dense<0.000000e+00> : vector<8xf32>
    %50 = vector.multi_reduction <add>, %49, %cst_37 [1] : vector<8x8xf32> to vector<8xf32>
    %51 = vector.shape_cast %50 : vector<8xf32> to vector<8x1xf32>
    %52 = tpu.reciprocal %51 : vector<8x1xf32> -> vector<8x1xf32>
    %53 = vector.broadcast %52 : vector<8x1xf32> to vector<8x8xf32>
    %54 = arith.mulf %49, %53 : vector<8x8xf32>
    %cst_38 = arith.constant dense<0.000000e+00> : vector<8x2xf32>
    %55 = tpu.matmul %54, %41, %cst_38 {dimension_numbers = #tpu.dot_dimension_numbers<[1], [0], [0], [1], [0, 0, 1, 1], [], []>} : vector<8x8xf32>, vector<8x2xf32>, vector<8x2xf32> -> vector<8x2xf32>
    %c1_39 = arith.constant 1 : index
    %c0_40 = arith.constant 0 : index
    %c0_41 = arith.constant 0 : index
    %56 = vector.load %arg5[%c1_39, %c0_40, %c0_41] : memref<4x2x4xf32, #tpu.memory_space<vmem>>, vector<1x2x4xf32>
    %57 = vector.shape_cast %56 : vector<1x2x4xf32> to vector<2x4xf32>
    %cst_42 = arith.constant dense<0.000000e+00> : vector<8x4xf32>
    %58 = tpu.matmul %55, %57, %cst_42 {dimension_numbers = #tpu.dot_dimension_numbers<[1], [0], [0], [1], [0, 0, 1, 1], [], []>} : vector<8x2xf32>, vector<2x4xf32>, vector<8x4xf32> -> vector<8x4xf32>
    %59 = arith.addf %32, %58 : vector<8x4xf32>
    %cst_43 = arith.constant 2.000000e+00 : f32
    %60 = vector.broadcast %cst_43 : f32 to vector<8x4xf32>
    %61 = arith.mulf %60, %1 : vector<8x4xf32>
    %62 = arith.addf %61, %59 : vector<8x4xf32>
    %c0_44 = arith.constant 0 : index
    %c0_45 = arith.constant 0 : index
    %c0_46 = arith.constant 0 : index
    %63 = vector.load %arg6[%c0_44, %c0_45, %c0_46] : memref<2x1x4xf32, #tpu.memory_space<vmem>>, vector<1x1x4xf32>
    %64 = vector.shape_cast %63 : vector<1x1x4xf32> to vector<1x4xf32>
    %65 = vector.broadcast %64 : vector<1x4xf32> to vector<8x4xf32>
    %66 = arith.addf %62, %65 : vector<8x4xf32>
    %c0_47 = arith.constant 0 : index
    %c0_48 = arith.constant 0 : index
    %c0_49 = arith.constant 0 : index
    %67 = vector.load %arg7[%c0_47, %c0_48, %c0_49] : memref<2x4x8xf32, #tpu.memory_space<vmem>>, vector<1x4x8xf32>
    %68 = vector.shape_cast %67 : vector<1x4x8xf32> to vector<4x8xf32>
    %cst_50 = arith.constant dense<0.000000e+00> : vector<8x8xf32>
    %69 = tpu.matmul %66, %68, %cst_50 {dimension_numbers = #tpu.dot_dimension_numbers<[1], [0], [0], [1], [0, 0, 1, 1], [], []>} : vector<8x4xf32>, vector<4x8xf32>, vector<8x8xf32> -> vector<8x8xf32>
    %c0_51 = arith.constant 0 : index
    %c0_52 = arith.constant 0 : index
    %c0_53 = arith.constant 0 : index
    %70 = vector.load %arg8[%c0_51, %c0_52, %c0_53] : memref<2x1x8xf32, #tpu.memory_space<vmem>>, vector<1x1x8xf32>
    %71 = vector.shape_cast %70 : vector<1x1x8xf32> to vector<1x8xf32>
    %72 = vector.broadcast %71 : vector<1x8xf32> to vector<8x8xf32>
    %73 = arith.addf %69, %72 : vector<8x8xf32>
    %cst_54 = arith.constant 0.000000e+00 : f32
    %74 = vector.broadcast %cst_54 : f32 to vector<8x8xf32>
    %75 = arith.maximumf %73, %74 : vector<8x8xf32>
    %c0_55 = arith.constant 0 : index
    %c0_56 = arith.constant 0 : index
    %c0_57 = arith.constant 0 : index
    %76 = vector.load %arg9[%c0_55, %c0_56, %c0_57] : memref<2x8x4xf32, #tpu.memory_space<vmem>>, vector<1x8x4xf32>
    %77 = vector.shape_cast %76 : vector<1x8x4xf32> to vector<8x4xf32>
    %cst_58 = arith.constant dense<0.000000e+00> : vector<8x4xf32>
    %78 = tpu.matmul %75, %77, %cst_58 {dimension_numbers = #tpu.dot_dimension_numbers<[1], [0], [0], [1], [0, 0, 1, 1], [], []>} : vector<8x8xf32>, vector<8x4xf32>, vector<8x4xf32> -> vector<8x4xf32>
    %c0_59 = arith.constant 0 : index
    %c0_60 = arith.constant 0 : index
    %c0_61 = arith.constant 0 : index
    %79 = vector.load %arg10[%c0_59, %c0_60, %c0_61] : memref<2x1x4xf32, #tpu.memory_space<vmem>>, vector<1x1x4xf32>
    %80 = vector.shape_cast %79 : vector<1x1x4xf32> to vector<1x4xf32>
    %81 = vector.broadcast %80 : vector<1x4xf32> to vector<8x4xf32>
    %82 = arith.addf %78, %81 : vector<8x4xf32>
    %cst_62 = arith.constant 0.000000e+00 : f32
    %83 = vector.broadcast %cst_62 : f32 to vector<8x4xf32>
    %c2 = arith.constant 2 : index
    %c0_63 = arith.constant 0 : index
    %c0_64 = arith.constant 0 : index
    %84 = vector.load %arg2[%c2, %c0_63, %c0_64] : memref<4x4x2xf32, #tpu.memory_space<vmem>>, vector<1x4x2xf32>
    %85 = vector.shape_cast %84 : vector<1x4x2xf32> to vector<4x2xf32>
    %cst_65 = arith.constant dense<0.000000e+00> : vector<8x2xf32>
    %86 = tpu.matmul %82, %85, %cst_65 {dimension_numbers = #tpu.dot_dimension_numbers<[1], [0], [0], [1], [0, 0, 1, 1], [], []>} : vector<8x4xf32>, vector<4x2xf32>, vector<8x2xf32> -> vector<8x2xf32>
    %c2_66 = arith.constant 2 : index
    %c0_67 = arith.constant 0 : index
    %c0_68 = arith.constant 0 : index
    %87 = vector.load %arg3[%c2_66, %c0_67, %c0_68] : memref<4x4x2xf32, #tpu.memory_space<vmem>>, vector<1x4x2xf32>
    %88 = vector.shape_cast %87 : vector<1x4x2xf32> to vector<4x2xf32>
    %cst_69 = arith.constant dense<0.000000e+00> : vector<8x2xf32>
    %89 = tpu.matmul %82, %88, %cst_69 {dimension_numbers = #tpu.dot_dimension_numbers<[1], [0], [0], [1], [0, 0, 1, 1], [], []>} : vector<8x4xf32>, vector<4x2xf32>, vector<8x2xf32> -> vector<8x2xf32>
    %c2_70 = arith.constant 2 : index
    %c0_71 = arith.constant 0 : index
    %c0_72 = arith.constant 0 : index
    %90 = vector.load %arg4[%c2_70, %c0_71, %c0_72] : memref<4x4x2xf32, #tpu.memory_space<vmem>>, vector<1x4x2xf32>
    %91 = vector.shape_cast %90 : vector<1x4x2xf32> to vector<4x2xf32>
    %cst_73 = arith.constant dense<0.000000e+00> : vector<8x2xf32>
    %92 = tpu.matmul %82, %91, %cst_73 {dimension_numbers = #tpu.dot_dimension_numbers<[1], [0], [0], [1], [0, 0, 1, 1], [], []>} : vector<8x4xf32>, vector<4x2xf32>, vector<8x2xf32> -> vector<8x2xf32>
    %cst_74 = arith.constant dense<0.000000e+00> : vector<8x8xf32>
    %93 = tpu.matmul %86, %89, %cst_74 {dimension_numbers = #tpu.dot_dimension_numbers<[1], [1], [0], [0], [0, 0, 1, 0], [], []>} : vector<8x2xf32>, vector<8x2xf32>, vector<8x8xf32> -> vector<8x8xf32>
    %cst_75 = arith.constant -1.000000e+30 : f32
    %94 = vector.broadcast %cst_75 : f32 to vector<8x8xf32>
    %95 = arith.select %4, %93, %94 : vector<8x8xi1>, vector<8x8xf32>
    %cst_76 = arith.constant dense<0xFF800000> : vector<8xf32>
    %96 = vector.multi_reduction <maximumf>, %95, %cst_76 [1] : vector<8x8xf32> to vector<8xf32>
    %97 = vector.shape_cast %96 : vector<8xf32> to vector<8x1xf32>
    %98 = vector.broadcast %97 : vector<8x1xf32> to vector<8x8xf32>
    %99 = arith.subf %95, %98 : vector<8x8xf32>
    %100 = math.exp %99 : vector<8x8xf32>
    %cst_77 = arith.constant dense<0.000000e+00> : vector<8xf32>
    %101 = vector.multi_reduction <add>, %100, %cst_77 [1] : vector<8x8xf32> to vector<8xf32>
    %102 = vector.shape_cast %101 : vector<8xf32> to vector<8x1xf32>
    %103 = tpu.reciprocal %102 : vector<8x1xf32> -> vector<8x1xf32>
    %104 = vector.broadcast %103 : vector<8x1xf32> to vector<8x8xf32>
    %105 = arith.mulf %100, %104 : vector<8x8xf32>
    %cst_78 = arith.constant dense<0.000000e+00> : vector<8x2xf32>
    %106 = tpu.matmul %105, %92, %cst_78 {dimension_numbers = #tpu.dot_dimension_numbers<[1], [0], [0], [1], [0, 0, 1, 1], [], []>} : vector<8x8xf32>, vector<8x2xf32>, vector<8x2xf32> -> vector<8x2xf32>
    %c2_79 = arith.constant 2 : index
    %c0_80 = arith.constant 0 : index
    %c0_81 = arith.constant 0 : index
    %107 = vector.load %arg5[%c2_79, %c0_80, %c0_81] : memref<4x2x4xf32, #tpu.memory_space<vmem>>, vector<1x2x4xf32>
    %108 = vector.shape_cast %107 : vector<1x2x4xf32> to vector<2x4xf32>
    %cst_82 = arith.constant dense<0.000000e+00> : vector<8x4xf32>
    %109 = tpu.matmul %106, %108, %cst_82 {dimension_numbers = #tpu.dot_dimension_numbers<[1], [0], [0], [1], [0, 0, 1, 1], [], []>} : vector<8x2xf32>, vector<2x4xf32>, vector<8x4xf32> -> vector<8x4xf32>
    %110 = arith.addf %83, %109 : vector<8x4xf32>
    %c3 = arith.constant 3 : index
    %c0_83 = arith.constant 0 : index
    %c0_84 = arith.constant 0 : index
    %111 = vector.load %arg2[%c3, %c0_83, %c0_84] : memref<4x4x2xf32, #tpu.memory_space<vmem>>, vector<1x4x2xf32>
    %112 = vector.shape_cast %111 : vector<1x4x2xf32> to vector<4x2xf32>
    %cst_85 = arith.constant dense<0.000000e+00> : vector<8x2xf32>
    %113 = tpu.matmul %82, %112, %cst_85 {dimension_numbers = #tpu.dot_dimension_numbers<[1], [0], [0], [1], [0, 0, 1, 1], [], []>} : vector<8x4xf32>, vector<4x2xf32>, vector<8x2xf32> -> vector<8x2xf32>
    %c3_86 = arith.constant 3 : index
    %c0_87 = arith.constant 0 : index
    %c0_88 = arith.constant 0 : index
    %114 = vector.load %arg3[%c3_86, %c0_87, %c0_88] : memref<4x4x2xf32, #tpu.memory_space<vmem>>, vector<1x4x2xf32>
    %115 = vector.shape_cast %114 : vector<1x4x2xf32> to vector<4x2xf32>
    %cst_89 = arith.constant dense<0.000000e+00> : vector<8x2xf32>
    %116 = tpu.matmul %82, %115, %cst_89 {dimension_numbers = #tpu.dot_dimension_numbers<[1], [0], [0], [1], [0, 0, 1, 1], [], []>} : vector<8x4xf32>, vector<4x2xf32>, vector<8x2xf32> -> vector<8x2xf32>
    %c3_90 = arith.constant 3 : index
    %c0_91 = arith.constant 0 : index
    %c0_92 = arith.constant 0 : index
    %117 = vector.load %arg4[%c3_90, %c0_91, %c0_92] : memref<4x4x2xf32, #tpu.memory_space<vmem>>, vector<1x4x2xf32>
    %118 = vector.shape_cast %117 : vector<1x4x2xf32> to vector<4x2xf32>
    %cst_93 = arith.constant dense<0.000000e+00> : vector<8x2xf32>
    %119 = tpu.matmul %82, %118, %cst_93 {dimension_numbers = #tpu.dot_dimension_numbers<[1], [0], [0], [1], [0, 0, 1, 1], [], []>} : vector<8x4xf32>, vector<4x2xf32>, vector<8x2xf32> -> vector<8x2xf32>
    %cst_94 = arith.constant dense<0.000000e+00> : vector<8x8xf32>
    %120 = tpu.matmul %113, %116, %cst_94 {dimension_numbers = #tpu.dot_dimension_numbers<[1], [1], [0], [0], [0, 0, 1, 0], [], []>} : vector<8x2xf32>, vector<8x2xf32>, vector<8x8xf32> -> vector<8x8xf32>
    %cst_95 = arith.constant -1.000000e+30 : f32
    %121 = vector.broadcast %cst_95 : f32 to vector<8x8xf32>
    %122 = arith.select %4, %120, %121 : vector<8x8xi1>, vector<8x8xf32>
    %cst_96 = arith.constant dense<0xFF800000> : vector<8xf32>
    %123 = vector.multi_reduction <maximumf>, %122, %cst_96 [1] : vector<8x8xf32> to vector<8xf32>
    %124 = vector.shape_cast %123 : vector<8xf32> to vector<8x1xf32>
    %125 = vector.broadcast %124 : vector<8x1xf32> to vector<8x8xf32>
    %126 = arith.subf %122, %125 : vector<8x8xf32>
    %127 = math.exp %126 : vector<8x8xf32>
    %cst_97 = arith.constant dense<0.000000e+00> : vector<8xf32>
    %128 = vector.multi_reduction <add>, %127, %cst_97 [1] : vector<8x8xf32> to vector<8xf32>
    %129 = vector.shape_cast %128 : vector<8xf32> to vector<8x1xf32>
    %130 = tpu.reciprocal %129 : vector<8x1xf32> -> vector<8x1xf32>
    %131 = vector.broadcast %130 : vector<8x1xf32> to vector<8x8xf32>
    %132 = arith.mulf %127, %131 : vector<8x8xf32>
    %cst_98 = arith.constant dense<0.000000e+00> : vector<8x2xf32>
    %133 = tpu.matmul %132, %119, %cst_98 {dimension_numbers = #tpu.dot_dimension_numbers<[1], [0], [0], [1], [0, 0, 1, 1], [], []>} : vector<8x8xf32>, vector<8x2xf32>, vector<8x2xf32> -> vector<8x2xf32>
    %c3_99 = arith.constant 3 : index
    %c0_100 = arith.constant 0 : index
    %c0_101 = arith.constant 0 : index
    %134 = vector.load %arg5[%c3_99, %c0_100, %c0_101] : memref<4x2x4xf32, #tpu.memory_space<vmem>>, vector<1x2x4xf32>
    %135 = vector.shape_cast %134 : vector<1x2x4xf32> to vector<2x4xf32>
    %cst_102 = arith.constant dense<0.000000e+00> : vector<8x4xf32>
    %136 = tpu.matmul %133, %135, %cst_102 {dimension_numbers = #tpu.dot_dimension_numbers<[1], [0], [0], [1], [0, 0, 1, 1], [], []>} : vector<8x2xf32>, vector<2x4xf32>, vector<8x4xf32> -> vector<8x4xf32>
    %137 = arith.addf %110, %136 : vector<8x4xf32>
    %cst_103 = arith.constant 2.000000e+00 : f32
    %138 = vector.broadcast %cst_103 : f32 to vector<8x4xf32>
    %139 = arith.mulf %138, %82 : vector<8x4xf32>
    %140 = arith.addf %139, %137 : vector<8x4xf32>
    %c1_104 = arith.constant 1 : index
    %c0_105 = arith.constant 0 : index
    %c0_106 = arith.constant 0 : index
    %141 = vector.load %arg6[%c1_104, %c0_105, %c0_106] : memref<2x1x4xf32, #tpu.memory_space<vmem>>, vector<1x1x4xf32>
    %142 = vector.shape_cast %141 : vector<1x1x4xf32> to vector<1x4xf32>
    %143 = vector.broadcast %142 : vector<1x4xf32> to vector<8x4xf32>
    %144 = arith.addf %140, %143 : vector<8x4xf32>
    %145 = vector.extract_strided_slice %144 {offsets = [0, 0], sizes = [1, 4], strides = [1, 1]} : vector<8x4xf32> to vector<1x4xf32>
    %c1_107 = arith.constant 1 : index
    %c0_108 = arith.constant 0 : index
    %c0_109 = arith.constant 0 : index
    %146 = vector.load %arg7[%c1_107, %c0_108, %c0_109] : memref<2x4x8xf32, #tpu.memory_space<vmem>>, vector<1x4x8xf32>
    %147 = vector.shape_cast %146 : vector<1x4x8xf32> to vector<4x8xf32>
    %cst_110 = arith.constant dense<0.000000e+00> : vector<1x8xf32>
    %148 = tpu.matmul %145, %147, %cst_110 {dimension_numbers = #tpu.dot_dimension_numbers<[1], [0], [0], [1], [0, 0, 1, 1], [], []>} : vector<1x4xf32>, vector<4x8xf32>, vector<1x8xf32> -> vector<1x8xf32>
    %c1_111 = arith.constant 1 : index
    %c0_112 = arith.constant 0 : index
    %c0_113 = arith.constant 0 : index
    %149 = vector.load %arg8[%c1_111, %c0_112, %c0_113] : memref<2x1x8xf32, #tpu.memory_space<vmem>>, vector<1x1x8xf32>
    %150 = vector.shape_cast %149 : vector<1x1x8xf32> to vector<1x8xf32>
    %151 = arith.addf %148, %150 : vector<1x8xf32>
    %cst_114 = arith.constant 0.000000e+00 : f32
    %152 = vector.broadcast %cst_114 : f32 to vector<1x8xf32>
    %153 = arith.maximumf %151, %152 : vector<1x8xf32>
    %c1_115 = arith.constant 1 : index
    %c0_116 = arith.constant 0 : index
    %c0_117 = arith.constant 0 : index
    %154 = vector.load %arg9[%c1_115, %c0_116, %c0_117] : memref<2x8x4xf32, #tpu.memory_space<vmem>>, vector<1x8x4xf32>
    %155 = vector.shape_cast %154 : vector<1x8x4xf32> to vector<8x4xf32>
    %cst_118 = arith.constant dense<0.000000e+00> : vector<1x4xf32>
    %156 = tpu.matmul %153, %155, %cst_118 {dimension_numbers = #tpu.dot_dimension_numbers<[1], [0], [0], [1], [0, 0, 1, 1], [], []>} : vector<1x8xf32>, vector<8x4xf32>, vector<1x4xf32> -> vector<1x4xf32>
    %c1_119 = arith.constant 1 : index
    %c0_120 = arith.constant 0 : index
    %c0_121 = arith.constant 0 : index
    %157 = vector.load %arg10[%c1_119, %c0_120, %c0_121] : memref<2x1x4xf32, #tpu.memory_space<vmem>>, vector<1x1x4xf32>
    %158 = vector.shape_cast %157 : vector<1x1x4xf32> to vector<1x4xf32>
    %159 = arith.addf %156, %158 : vector<1x4xf32>
    %c0_122 = arith.constant 0 : index
    %c0_123 = arith.constant 0 : index
    %c0_124 = arith.constant 0 : index
    %160 = vector.load %arg11[%c0_122, %c0_123, %c0_124] : memref<1x1x4xf32, #tpu.memory_space<vmem>>, vector<1x1x4xf32>
    %161 = vector.shape_cast %160 : vector<1x1x4xf32> to vector<1x4xf32>
    %162 = vector.shape_cast %159 : vector<1x4xf32> to vector<1x1x4xf32>
    tpu.vector_store %arg11[%c0_122, %c0_123, %c0_124], %162 {strides = array<i32>} : memref<1x1x4xf32, #tpu.memory_space<vmem>>, vector<1x1x4xf32>,
    return
  }
  func.func @transform_0(%arg0: i32) -> (i32, i32, i32) {
    %c0_i32 = arith.constant 0 : i32
    %c0_i32_0 = arith.constant 0 : i32
    %c0_i32_1 = arith.constant 0 : i32
    return %arg0, %c0_i32, %c0_i32_0 : i32, i32, i32
  }
  func.func @transform_1(%arg0: i32) -> (i32, i32, i32) {
    %c0_i32 = arith.constant 0 : i32
    %c0_i32_0 = arith.constant 0 : i32
    %c0_i32_1 = arith.constant 0 : i32
    %c0_i32_2 = arith.constant 0 : i32
    return %c0_i32, %c0_i32_0, %c0_i32_1 : i32, i32, i32
  }
  func.func @transform_2(%arg0: i32) -> (i32, i32, i32) {
    %c0_i32 = arith.constant 0 : i32
    %c0_i32_0 = arith.constant 0 : i32
    %c0_i32_1 = arith.constant 0 : i32
    %c0_i32_2 = arith.constant 0 : i32
    return %c0_i32, %c0_i32_0, %c0_i32_1 : i32, i32, i32
  }
  func.func @transform_3(%arg0: i32) -> (i32, i32, i32) {
    %c0_i32 = arith.constant 0 : i32
    %c0_i32_0 = arith.constant 0 : i32
    %c0_i32_1 = arith.constant 0 : i32
    %c0_i32_2 = arith.constant 0 : i32
    return %c0_i32, %c0_i32_0, %c0_i32_1 : i32, i32, i32
  }
  func.func @transform_4(%arg0: i32) -> (i32, i32, i32) {
    %c0_i32 = arith.constant 0 : i32
    %c0_i32_0 = arith.constant 0 : i32
    %c0_i32_1 = arith.constant 0 : i32
    %c0_i32_2 = arith.constant 0 : i32
    return %c0_i32, %c0_i32_0, %c0_i32_1 : i32, i32, i32
  }
  func.func @transform_5(%arg0: i32) -> (i32, i32, i32) {
    %c0_i32 = arith.constant 0 : i32
    %c0_i32_0 = arith.constant 0 : i32
    %c0_i32_1 = arith.constant 0 : i32
    %c0_i32_2 = arith.constant 0 : i32
    return %c0_i32, %c0_i32_0, %c0_i32_1 : i32, i32, i32
  }
  func.func @transform_6(%arg0: i32) -> (i32, i32, i32) {
    %c0_i32 = arith.constant 0 : i32
    %c0_i32_0 = arith.constant 0 : i32
    %c0_i32_1 = arith.constant 0 : i32
    %c0_i32_2 = arith.constant 0 : i32
    return %c0_i32, %c0_i32_0, %c0_i32_1 : i32, i32, i32
  }
  func.func @transform_7(%arg0: i32) -> (i32, i32, i32) {
    %c0_i32 = arith.constant 0 : i32
    %c0_i32_0 = arith.constant 0 : i32
    %c0_i32_1 = arith.constant 0 : i32
    %c0_i32_2 = arith.constant 0 : i32
    return %c0_i32, %c0_i32_0, %c0_i32_1 : i32, i32, i32
  }
  func.func @transform_8(%arg0: i32) -> (i32, i32, i32) {
    %c0_i32 = arith.constant 0 : i32
    %c0_i32_0 = arith.constant 0 : i32
    %c0_i32_1 = arith.constant 0 : i32
    %c0_i32_2 = arith.constant 0 : i32
    return %c0_i32, %c0_i32_0, %c0_i32_1 : i32, i32, i32
  }
  func.func @transform_9(%arg0: i32) -> (i32, i32, i32) {
    %c0_i32 = arith.constant 0 : i32
    %c0_i32_0 = arith.constant 0 : i32
    %c0_i32_1 = arith.constant 0 : i32
    %c0_i32_2 = arith.constant 0 : i32
    return %c0_i32, %c0_i32_0, %c0_i32_1 : i32, i32, i32
  }
  func.func @transform_10(%arg0: i32) -> (i32, i32, i32) {
    %c0_i32 = arith.constant 0 : i32
    %c0_i32_0 = arith.constant 0 : i32
    %c0_i32_1 = arith.constant 0 : i32
    return %arg0, %c0_i32, %c0_i32_0 : i32, i32, i32
  }
}

</mosaic_0001>

<llo_original>
// kernel: tpu_custom_call.1
$region0: #{tpu_custom_call.1}
  #allocation0 [shape = 'u32[]', space=smem, size = 0x4, offset = 0x4, fixed_abs, tag = 'smem constant byte address 0x4 - core index']
  #allocation1 [shape = 'u32[144,128]{1,0:T(1,128)}', space=vmem, size = 0x12000, scoped, tag = 'internal scratch']
  %s0 = inlined_call_operand.vmem [shape: f32[2,8,4], index: 0, kind: input, shape index: {}]
  %s1 = inlined_call_operand.vmem [shape: f32[4,4,2], index: 1, kind: input, shape index: {}]
  %s2 = inlined_call_operand.vmem [shape: f32[4,4,2], index: 2, kind: input, shape index: {}]
  %s3 = inlined_call_operand.vmem [shape: f32[4,4,2], index: 3, kind: input, shape index: {}]
  %s4 = inlined_call_operand.vmem [shape: f32[4,2,4], index: 4, kind: input, shape index: {}]
  %s5 = inlined_call_operand.vmem [shape: f32[2,1,4], index: 5, kind: input, shape index: {}]
  %s6 = inlined_call_operand.vmem [shape: f32[2,4,8], index: 6, kind: input, shape index: {}]
  %s7 = inlined_call_operand.vmem [shape: f32[2,1,8], index: 7, kind: input, shape index: {}]
  %s8 = inlined_call_operand.vmem [shape: f32[2,8,4], index: 8, kind: input, shape index: {}]
  %s9 = inlined_call_operand.vmem [shape: f32[2,1,4], index: 9, kind: input, shape index: {}]
  %s10 = inlined_call_operand.hbm [shape: f32[2,1,4], index: 10, kind: output, shape index: {}]
  %s11 = sld [smem:[#allocation0]]
  $region73: #{tpu_custom_call.1} parent=0
    _
  %s13 = ssub.s32 1, %s11
  %s14 = scalar_select 0, %s13, %s11
  $region1: #{tpu_custom_call.1} parent=0
    #allocation2 [shape = 'u8[1024]{0}', space=vmem, size = 0x400, scoped, tag = 'output window, operand 0']
    #allocation3 [shape = 's32[2]{0}', space=sflag, size = 0x8, scoped, tag = 'scoped memory for tpu_custom_call.1']
    %15 = vsyncpa [#allocation3], 0
    %s16 = scalar_lea.sflag [#allocation3], 1
    %17 = vsyncpa %s16, 0
    loop: start=0, step=1, limit=4
    $region2: #{tpu_custom_call.1} parent=1 // loop_pre_header
      _
    $region3: #{tpu_custom_call.1} parent=1 // loop_header
      %s19 = sphi 0, %s23
      %p20 = scmp.ge.s32.totalorder %s19, 4
      %s29 = sphi 0, %s31
      %s32 = sphi 0, %s29
      %s33 = sphi 0, %s32
      %s49 = sphi 0, %s33
      %s53 = sphi 0, %s53
      %s55 = sphi 0, %s53
      %s56 = sphi 0, %s55
      %s70 = sphi 0, %s56
      %s74 = sphi 0, %s74
      %s76 = sphi 0, %s74
      %s77 = sphi 0, %s76
      %s91 = sphi 0, %s77
      %s95 = sphi 0, %s95
      %s97 = sphi 0, %s95
      %s98 = sphi 0, %s97
      %s112 = sphi 0, %s98
      %s116 = sphi 0, %s116
      %s118 = sphi 0, %s116
      %s119 = sphi 0, %s118
      %s133 = sphi 0, %s119
      %s137 = sphi 0, %s137
      %s139 = sphi 0, %s137
      %s140 = sphi 0, %s139
      %s154 = sphi 0, %s140
      %s158 = sphi 0, %s158
      %s160 = sphi 0, %s158
      %s161 = sphi 0, %s160
      %s175 = sphi 0, %s161
      %s179 = sphi 0, %s179
      %s181 = sphi 0, %s179
      %s182 = sphi 0, %s181
      %s196 = sphi 0, %s182
      %s200 = sphi 0, %s200
      %s202 = sphi 0, %s200
      %s203 = sphi 0, %s202
      %s217 = sphi 0, %s203
      %s221 = sphi 0, %s221
      %s223 = sphi 0, %s221
      %s224 = sphi 0, %s223
      %s238 = sphi 0, %s224
      %s244 = sphi 0, %s246
      %s247 = sphi 0, %s244
      %s248 = sphi 0, %s247
      %s264 = sphi 0, %s248
    $region4: #{tpu_custom_call.1} parent=1 // loop_header_branch
      %22 = sbr.rel (%p20) target = $region8
    $region5: #{tpu_custom_call.1} parent=1 // loop_body
      %s24 = ssub.s32 %s19, 1
      %s25 = ssub.s32 %s19, 2
      %s26 = sadd.s32 %s19, 1
      %s27 = ssub.s32 %s19, %s26
      %p28 = scmp.eq.s32.totalorder %s27, 0
      %s30 = sadd.s32 %s29, 1
      %s31 = scalar_select %p28, %s29, %s30
      %p34 = pneg %p28
      %p35 = scmp.eq.s32.totalorder %s19, 1
      %p36 = por %p34, %p35
      %p37 = scmp.ne.s32.totalorder %s29, %s32
      %p38 = scmp.eq.s32.totalorder %s19, 0
      %p39 = por %p37, %p38
      %p40 = scmp.ne.s32.totalorder %s29, %s32
      %p41 = scmp.eq.s32.totalorder %s24, 1
      %p42 = por %p40, %p41
      %p43 = scmp.ne.s32.totalorder %s32, %s33
      %p44 = scmp.eq.s32.totalorder %s24, 0
      %p45 = por %p43, %p44
      %p46 = scmp.ne.s32.totalorder %s32, %s33
      %p47 = scmp.eq.s32.totalorder %s25, 1
      %p48 = por %p46, %p47
      %p50 = scmp.ne.s32.totalorder %s33, %s49
      %p51 = scmp.eq.s32.totalorder %s25, 0
      %p52 = por %p50, %p51
      %s54 = sadd.s32 %s53, 1
      %p57 = scmp.eq.s32.totalorder %s19, 1
      %p58 = scmp.ne.s32.totalorder %s53, %s55
      %p59 = scmp.eq.s32.totalorder %s19, 0
      %p60 = por %p58, %p59
      %p61 = scmp.ne.s32.totalorder %s53, %s55
      %p62 = scmp.eq.s32.totalorder %s24, 1
      %p63 = por %p61, %p62
      %p64 = scmp.ne.s32.totalorder %s55, %s56
      %p65 = scmp.eq.s32.totalorder %s24, 0
      %p66 = por %p64, %p65
      %p67 = scmp.ne.s32.totalorder %s55, %s56
      %p68 = scmp.eq.s32.totalorder %s25, 1
      %p69 = por %p67, %p68
      %p71 = scmp.ne.s32.totalorder %s56, %s70
      %p72 = scmp.eq.s32.totalorder %s25, 0
      %p73 = por %p71, %p72
      %s75 = sadd.s32 %s74, 1
      %p78 = scmp.eq.s32.totalorder %s19, 1
      %p79 = scmp.ne.s32.totalorder %s74, %s76
      %p80 = scmp.eq.s32.totalorder %s19, 0
      %p81 = por %p79, %p80
      %p82 = scmp.ne.s32.totalorder %s74, %s76
      %p83 = scmp.eq.s32.totalorder %s24, 1
      %p84 = por %p82, %p83
      %p85 = scmp.ne.s32.totalorder %s76, %s77
      %p86 = scmp.eq.s32.totalorder %s24, 0
      %p87 = por %p85, %p86
      %p88 = scmp.ne.s32.totalorder %s76, %s77
      %p89 = scmp.eq.s32.totalorder %s25, 1
      %p90 = por %p88, %p89
      %p92 = scmp.ne.s32.totalorder %s77, %s91
      %p93 = scmp.eq.s32.totalorder %s25, 0
      %p94 = por %p92, %p93
      %s96 = sadd.s32 %s95, 1
      %p99 = scmp.eq.s32.totalorder %s19, 1
      %p100 = scmp.ne.s32.totalorder %s95, %s97
      %p101 = scmp.eq.s32.totalorder %s19, 0
      %p102 = por %p100, %p101
      %p103 = scmp.ne.s32.totalorder %s95, %s97
      %p104 = scmp.eq.s32.totalorder %s24, 1
      %p105 = por %p103, %p104
      %p106 = scmp.ne.s32.totalorder %s97, %s98
      %p107 = scmp.eq.s32.totalorder %s24, 0
      %p108 = por %p106, %p107
      %p109 = scmp.ne.s32.totalorder %s97, %s98
      %p110 = scmp.eq.s32.totalorder %s25, 1
      %p111 = por %p109, %p110
      %p113 = scmp.ne.s32.totalorder %s98, %s112
      %p114 = scmp.eq.s32.totalorder %s25, 0
      %p115 = por %p113, %p114
      %s117 = sadd.s32 %s116, 1
      %p120 = scmp.eq.s32.totalorder %s19, 1
      %p121 = scmp.ne.s32.totalorder %s116, %s118
      %p122 = scmp.eq.s32.totalorder %s19, 0
      %p123 = por %p121, %p122
      %p124 = scmp.ne.s32.totalorder %s116, %s118
      %p125 = scmp.eq.s32.totalorder %s24, 1
      %p126 = por %p124, %p125
      %p127 = scmp.ne.s32.totalorder %s118, %s119
      %p128 = scmp.eq.s32.totalorder %s24, 0
      %p129 = por %p127, %p128
      %p130 = scmp.ne.s32.totalorder %s118, %s119
      %p131 = scmp.eq.s32.totalorder %s25, 1
      %p132 = por %p130, %p131
      %p134 = scmp.ne.s32.totalorder %s119, %s133
      %p135 = scmp.eq.s32.totalorder %s25, 0
      %p136 = por %p134, %p135
      %s138 = sadd.s32 %s137, 1
      %p141 = scmp.eq.s32.totalorder %s19, 1
      %p142 = scmp.ne.s32.totalorder %s137, %s139
      %p143 = scmp.eq.s32.totalorder %s19, 0
      %p144 = por %p142, %p143
      %p145 = scmp.ne.s32.totalorder %s137, %s139
      %p146 = scmp.eq.s32.totalorder %s24, 1
      %p147 = por %p145, %p146
      %p148 = scmp.ne.s32.totalorder %s139, %s140
      %p149 = scmp.eq.s32.totalorder %s24, 0
      %p150 = por %p148, %p149
      %p151 = scmp.ne.s32.totalorder %s139, %s140
      %p152 = scmp.eq.s32.totalorder %s25, 1
      %p153 = por %p151, %p152
      %p155 = scmp.ne.s32.totalorder %s140, %s154
      %p156 = scmp.eq.s32.totalorder %s25, 0
      %p157 = por %p155, %p156
      %s159 = sadd.s32 %s158, 1
      %p162 = scmp.eq.s32.totalorder %s19, 1
      %p163 = scmp.ne.s32.totalorder %s158, %s160
      %p164 = scmp.eq.s32.totalorder %s19, 0
      %p165 = por %p163, %p164
      %p166 = scmp.ne.s32.totalorder %s158, %s160
      %p167 = scmp.eq.s32.totalorder %s24, 1
      %p168 = por %p166, %p167
      %p169 = scmp.ne.s32.totalorder %s160, %s161
      %p170 = scmp.eq.s32.totalorder %s24, 0
      %p171 = por %p169, %p170
      %p172 = scmp.ne.s32.totalorder %s160, %s161
      %p173 = scmp.eq.s32.totalorder %s25, 1
      %p174 = por %p172, %p173
      %p176 = scmp.ne.s32.totalorder %s161, %s175
      %p177 = scmp.eq.s32.totalorder %s25, 0
      %p178 = por %p176, %p177
      %s180 = sadd.s32 %s179, 1
      %p183 = scmp.eq.s32.totalorder %s19, 1
      %p184 = scmp.ne.s32.totalorder %s179, %s181
      %p185 = scmp.eq.s32.totalorder %s19, 0
      %p186 = por %p184, %p185
      %p187 = scmp.ne.s32.totalorder %s179, %s181
      %p188 = scmp.eq.s32.totalorder %s24, 1
      %p189 = por %p187, %p188
      %p190 = scmp.ne.s32.totalorder %s181, %s182
      %p191 = scmp.eq.s32.totalorder %s24, 0
      %p192 = por %p190, %p191
      %p193 = scmp.ne.s32.totalorder %s181, %s182
      %p194 = scmp.eq.s32.totalorder %s25, 1
      %p195 = por %p193, %p194
      %p197 = scmp.ne.s32.totalorder %s182, %s196
      %p198 = scmp.eq.s32.totalorder %s25, 0
      %p199 = por %p197, %p198
      %s201 = sadd.s32 %s200, 1
      %p204 = scmp.eq.s32.totalorder %s19, 1
      %p205 = scmp.ne.s32.totalorder %s200, %s202
      %p206 = scmp.eq.s32.totalorder %s19, 0
      %p207 = por %p205, %p206
      %p208 = scmp.ne.s32.totalorder %s200, %s202
      %p209 = scmp.eq.s32.totalorder %s24, 1
      %p210 = por %p208, %p209
      %p211 = scmp.ne.s32.totalorder %s202, %s203
      %p212 = scmp.eq.s32.totalorder %s24, 0
      %p213 = por %p211, %p212
      %p214 = scmp.ne.s32.totalorder %s202, %s203
      %p215 = scmp.eq.s32.totalorder %s25, 1
      %p216 = por %p214, %p215
      %p218 = scmp.ne.s32.totalorder %s203, %s217
      %p219 = scmp.eq.s32.totalorder %s25, 0
      %p220 = por %p218, %p219
      %s222 = sadd.s32 %s221, 1
      %p225 = scmp.eq.s32.totalorder %s19, 1
      %p226 = scmp.ne.s32.totalorder %s221, %s223
      %p227 = scmp.eq.s32.totalorder %s19, 0
      %p228 = por %p226, %p227
      %p229 = scmp.ne.s32.totalorder %s221, %s223
      %p230 = scmp.eq.s32.totalorder %s24, 1
      %p231 = por %p229, %p230
      %p232 = scmp.ne.s32.totalorder %s223, %s224
      %p233 = scmp.eq.s32.totalorder %s24, 0
      %p234 = por %p232, %p233
      %p235 = scmp.ne.s32.totalorder %s223, %s224
      %p236 = scmp.eq.s32.totalorder %s25, 1
      %p237 = por %p235, %p236
      %p239 = scmp.ne.s32.totalorder %s224, %s238
      %p240 = scmp.eq.s32.totalorder %s25, 0
      %p241 = por %p239, %p240
      %s242 = ssub.s32 %s19, %s26
      %p243 = scmp.eq.s32.totalorder %s242, 0
      %s245 = sadd.s32 %s244, 1
      %s246 = scalar_select %p243, %s244, %s245
      %p249 = pneg %p243
      %p250 = scmp.eq.s32.totalorder %s19, 1
      %p251 = por %p249, %p250
      %p252 = scmp.ne.s32.totalorder %s244, %s247
      %p253 = scmp.eq.s32.totalorder %s19, 0
      %p254 = por %p252, %p253
      %p255 = scmp.ne.s32.totalorder %s244, %s247
      %p256 = scmp.eq.s32.totalorder %s24, 1
      %p257 = por %p255, %p256
      %p258 = scmp.ne.s32.totalorder %s247, %s248
      %p259 = scmp.eq.s32.totalorder %s24, 0
      %p260 = por %p258, %p259
      %p261 = scmp.ne.s32.totalorder %s247, %s248
      %p262 = scmp.eq.s32.totalorder %s25, 1
      %p263 = por %p261, %p262
      %p265 = scmp.ne.s32.totalorder %s248, %s264
      %p266 = scmp.eq.s32.totalorder %s25, 0
      %p267 = por %p265, %p266
      %p268 = scmp.le.s32.totalorder 1, %s19
      %p269 = scmp.lt.s32.totalorder %s19, 3
      %p270 = pnand %p268, %p269
      %p271 = pneg %p270
      // Predicated region
      $region9: #{tpu_custom_call.1} parent=5 // pred_check
        _
      $region10: #{tpu_custom_call.1} parent=5 // pred_check_branch
        %273 = sbr.rel (%p270) target = $region12
      $region11: #{tpu_custom_call.1} parent=5 // pred_region
        %s274 = ssub.s32 %s19, 1
        // Predicated region
        $region13: #{tpu_custom_call.1} parent=11 // pred_check
          %p275 = pneg %p66
        $region14: #{tpu_custom_call.1} parent=11 // pred_check_branch
          %277 = sbr.rel (%p275) target = $region16
        $region15: #{tpu_custom_call.1} parent=11 // pred_region
          _
        $region16: #{tpu_custom_call.1} parent=11 // pred_fallthru
          _
        // Predicated region
        $region17: #{tpu_custom_call.1} parent=11 // pred_check
          %p278 = pneg %p87
        $region18: #{tpu_custom_call.1} parent=11 // pred_check_branch
          %280 = sbr.rel (%p278) target = $region20
        $region19: #{tpu_custom_call.1} parent=11 // pred_region
          _
        $region20: #{tpu_custom_call.1} parent=11 // pred_fallthru
          _
        // Predicated region
        $region21: #{tpu_custom_call.1} parent=11 // pred_check
          %p281 = pneg %p108
        $region22: #{tpu_custom_call.1} parent=11 // pred_check_branch
          %283 = sbr.rel (%p281) target = $region24
        $region23: #{tpu_custom_call.1} parent=11 // pred_region
          _
        $region24: #{tpu_custom_call.1} parent=11 // pred_fallthru
          _
        // Predicated region
        $region25: #{tpu_custom_call.1} parent=11 // pred_check
          %p284 = pneg %p129
        $region26: #{tpu_custom_call.1} parent=11 // pred_check_branch
          %286 = sbr.rel (%p284) target = $region28
        $region27: #{tpu_custom_call.1} parent=11 // pred_region
          _
        $region28: #{tpu_custom_call.1} parent=11 // pred_fallthru
          _
        // Predicated region
        $region29: #{tpu_custom_call.1} parent=11 // pred_check
          %p287 = pneg %p150
        $region30: #{tpu_custom_call.1} parent=11 // pred_check_branch
          %289 = sbr.rel (%p287) target = $region32
        $region31: #{tpu_custom_call.1} parent=11 // pred_region
          _
        $region32: #{tpu_custom_call.1} parent=11 // pred_fallthru
          _
        // Predicated region
        $region33: #{tpu_custom_call.1} parent=11 // pred_check
          %p290 = pneg %p171
        $region34: #{tpu_custom_call.1} parent=11 // pred_check_branch
          %292 = sbr.rel (%p290) target = $region36
        $region35: #{tpu_custom_call.1} parent=11 // pred_region
          _
        $region36: #{tpu_custom_call.1} parent=11 // pred_fallthru
          _
        // Predicated region
        $region37: #{tpu_custom_call.1} parent=11 // pred_check
          %p293 = pneg %p192
        $region38: #{tpu_custom_call.1} parent=11 // pred_check_branch
          %295 = sbr.rel (%p293) target = $region40
        $region39: #{tpu_custom_call.1} parent=11 // pred_region
          _
        $region40: #{tpu_custom_call.1} parent=11 // pred_fallthru
          _
        // Predicated region
        $region41: #{tpu_custom_call.1} parent=11 // pred_check
          %p296 = pneg %p213
        $region42: #{tpu_custom_call.1} parent=11 // pred_check_branch
          %298 = sbr.rel (%p296) target = $region44
        $region43: #{tpu_custom_call.1} parent=11 // pred_region
          _
        $region44: #{tpu_custom_call.1} parent=11 // pred_fallthru
          _
        // Predicated region
        $region45: #{tpu_custom_call.1} parent=11 // pred_check
          %p299 = pneg %p234
        $region46: #{tpu_custom_call.1} parent=11 // pred_check_branch
          %301 = sbr.rel (%p299) target = $region48
        $region47: #{tpu_custom_call.1} parent=11 // pred_region
          _
        $region48: #{tpu_custom_call.1} parent=11 // pred_fallthru
          _
      $region12: #{tpu_custom_call.1} parent=5 // pred_fallthru
        _
      %p302 = scmp.lt.s32.totalorder %s19, 2
      // Predicated region
      $region49: #{tpu_custom_call.1} parent=5 // pred_check
        %p303 = pneg %p302
      $region50: #{tpu_custom_call.1} parent=5 // pred_check_branch
        %305 = sbr.rel (%p303) target = $region52
      $region51: #{tpu_custom_call.1} parent=5 // pred_region
        // Predicated region
        $region53: #{tpu_custom_call.1} parent=51 // pred_check
          %p306 = pneg %p39
        $region54: #{tpu_custom_call.1} parent=51 // pred_check_branch
          %308 = sbr.rel (%p306) target = $region56
        $region55: #{tpu_custom_call.1} parent=51 // pred_region
          %p309 = scmp.lt.s32.totalorder %s19, 1
          %s310 = scalar_select %p309, %s19, 1
          %s311 = smul.addr %s310, 8
          %s312 = scalar_lea.vmem %s0, %s311
        $region56: #{tpu_custom_call.1} parent=51 // pred_fallthru
          _
      $region52: #{tpu_custom_call.1} parent=5 // pred_fallthru
        _
      %p313 = scmp.le.s32.totalorder 1, %s19
      %p314 = scmp.lt.s32.totalorder %s19, 3
      %p315 = pnand %p313, %p314
      %p316 = pneg %p315
      // Predicated region
      $region57: #{tpu_custom_call.1} parent=5 // pred_check
        _
      $region58: #{tpu_custom_call.1} parent=5 // pred_check_branch
        %318 = sbr.rel (%p315) target = $region60
      $region59: #{tpu_custom_call.1} parent=5 // pred_region
        %s319 = ssub.s32 %s19, 1
        %p320 = scmp.lt.s32.totalorder %s24, 1
        %s321 = scalar_select %p320, %s24, 1
        %s322 = smul.addr %s321, 8
        %s323 = scalar_lea.vmem %s0, %s322
        %p324 = pneg %p45
        %p325 = pneg %p42
        %p326 = pneg %p66
        %p327 = pneg %p63
        %p328 = pneg %p87
        %p329 = pneg %p84
        %p330 = pneg %p108
        %p331 = pneg %p105
        %p332 = pneg %p129
        %p333 = pneg %p126
        %p334 = pneg %p150
        %p335 = pneg %p147
        %p336 = pneg %p171
        %p337 = pneg %p168
        %p338 = pneg %p192
        %p339 = pneg %p189
        %p340 = pneg %p213
        %p341 = pneg %p210
        %p342 = pneg %p234
        %p343 = pneg %p231
        %p344 = pneg %p260
        %p345 = pneg %p257
        %s346 = sand.u32 %s247, 1
        %s347 = scalar_lea.sflag [#allocation3], %s346
        %s348 = sand.u32 %s247, 1
        %s349 = scalar_lea.vmem [#allocation2], %s348
        %p350 = scmp.lt.s32.totalorder %s24, 1
        %s351 = scalar_select %p350, %s24, 1
        %s352 = smul.addr %s351, 8
        %s353 = scalar_lea.vmem %s0, %s352
        %v354 = vld [vmem:[%s353] sm:$0xff]
        %v355 = vlaneseq
        %v356 = vand.u32 %v355, 127
        %vm357 = vcmp.gt.s32.totalorder %v356, 0
        %v358 = vld [vmem:[%s1] sm:$0xf]
        %vm359 = vcmask 31744
        %v361 = vsel %vm359, %v354, 0
        %vm363 = vcmask 1043456
        %v365 = vsel %vm363, %v358, 0
        %367 = vmatprep.subr.mxu0 0.0
        %368 = vmatpush1.msra.mxu0 %v365
        %369 = vmatprep.subr.mxu0 0.0
        %370 = vmatpush1.msra.mxu0 0.0
        %371 = vmatprep.subr.mxu0 0.0
        %372 = vmatpush1.msra.mxu0 0.0
        %373 = vmatprep.subr.mxu0 0.0
        %374 = vmatpush1.msra.mxu0 0.0
        %375 = vmatprep.subr.mxu0 0.0
        %376 = vmatpush1.msra.mxu0 0.0
        %377 = vmatprep.subr.mxu0 0.0
        %378 = vmatpush1.msra.mxu0 0.0
        %379 = vmatprep.subr.mxu0 0.0
        %380 = vmatpush1.msra.mxu0 0.0
        %381 = vmatprep.subr.mxu0 0.0
        %382 = vmatpush1.msra.mxu0 0.0
        %383 = vmatprep.subr.mxu0 0.0
        %384 = vmatpush1.msra.mxu0 0.0
        %385 = vmatprep.subr.mxu0 0.0
        %386 = vmatpush1.msra.mxu0 0.0
        %387 = vmatprep.subr.mxu0 0.0
        %388 = vmatpush1.msra.mxu0 0.0
        %389 = vmatprep.subr.mxu0 0.0
        %390 = vmatpush1.msra.mxu0 0.0
        %391 = vmatprep.subr.mxu0 0.0
        %392 = vmatpush1.msra.mxu0 0.0
        %393 = vmatprep.subr.mxu0 0.0
        %394 = vmatpush1.msra.mxu0 0.0
        %395 = vmatprep.subr.mxu0 0.0
        %396 = vmatpush1.msra.mxu0 0.0
        %397 = vmatprep.subr.mxu0 0.0
        %398 = vmatpush1.msra.mxu0 0.0
        %399 = vmatprep.subr.mxu0 0.0
        %400 = vmatpush1.msra.mxu0 0.0
        %401 = vmatprep.subr.mxu0 0.0
        %402 = vmatpush1.msra.mxu0 0.0
        %403 = vmatprep.subr.mxu0 0.0
        %404 = vmatpush1.msra.mxu0 0.0
        %405 = vmatprep.subr.mxu0 0.0
        %406 = vmatpush1.msra.mxu0 0.0
        %407 = vmatprep.subr.mxu0 0.0
        %408 = vmatpush1.msra.mxu0 0.0
        %409 = vmatprep.subr.mxu0 0.0
        %410 = vmatpush1.msra.mxu0 0.0
        %411 = vmatprep.subr.mxu0 0.0
        %412 = vmatpush1.msra.mxu0 0.0
        %413 = vmatprep.subr.mxu0 0.0
        %414 = vmatpush1.msra.mxu0 0.0
        %415 = vmatprep.subr.mxu0 0.0
        %416 = vmatpush1.msra.mxu0 0.0
        %417 = vmatprep.subr.mxu0 0.0
        %418 = vmatpush1.msra.mxu0 0.0
        %419 = vmatprep.subr.mxu0 0.0
        %420 = vmatpush1.msra.mxu0 0.0
        %421 = vmatprep.subr.mxu0 0.0
        %422 = vmatpush1.msra.mxu0 0.0
        %423 = vmatprep.subr.mxu0 0.0
        %424 = vmatpush1.msra.mxu0 0.0
        %425 = vmatprep.subr.mxu0 0.0
        %426 = vmatpush1.msra.mxu0 0.0
        %427 = vmatprep.subr.mxu0 0.0
        %428 = vmatpush1.msra.mxu0 0.0
        %429 = vmatprep.subr.mxu0 0.0
        %430 = vmatpush1.msra.mxu0 0.0
        %431 = vmatprep.mubr.f32.mxu0 0.0
        %432 = vmatmul.mubr.f32.gmra.mrb[0].mxu0 %v361
        %v433 = vpop.f32.mrb[0].mxu0
        %v434 = vadd.f32 0.0, %v433
        %v435 = vpop.f32.mrb[0].mxu0
        %436 = vdwg.mxu0
        %v437 = vld [vmem:[%s2] sm:$0xf]
        %v439 = vsel %vm363, %v437, 0
        %441 = vmatprep.subr.mxu0 0.0
        %442 = vmatpush1.msra.mxu0 %v439
        %443 = vmatprep.subr.mxu0 0.0
        %444 = vmatpush1.msra.mxu0 0.0
        %445 = vmatprep.subr.mxu0 0.0
        %446 = vmatpush1.msra.mxu0 0.0
        %447 = vmatprep.subr.mxu0 0.0
        %448 = vmatpush1.msra.mxu0 0.0
        %449 = vmatprep.subr.mxu0 0.0
        %450 = vmatpush1.msra.mxu0 0.0
        %451 = vmatprep.subr.mxu0 0.0
        %452 = vmatpush1.msra.mxu0 0.0
        %453 = vmatprep.subr.mxu0 0.0
        %454 = vmatpush1.msra.mxu0 0.0
        %455 = vmatprep.subr.mxu0 0.0
        %456 = vmatpush1.msra.mxu0 0.0
        %457 = vmatprep.subr.mxu0 0.0
        %458 = vmatpush1.msra.mxu0 0.0
        %459 = vmatprep.subr.mxu0 0.0
        %460 = vmatpush1.msra.mxu0 0.0
        %461 = vmatprep.subr.mxu0 0.0
        %462 = vmatpush1.msra.mxu0 0.0
        %463 = vmatprep.subr.mxu0 0.0
        %464 = vmatpush1.msra.mxu0 0.0
        %465 = vmatprep.subr.mxu0 0.0
        %466 = vmatpush1.msra.mxu0 0.0
        %467 = vmatprep.subr.mxu0 0.0
        %468 = vmatpush1.msra.mxu0 0.0
        %469 = vmatprep.subr.mxu0 0.0
        %470 = vmatpush1.msra.mxu0 0.0
        %471 = vmatprep.subr.mxu0 0.0
        %472 = vmatpush1.msra.mxu0 0.0
        %473 = vmatprep.subr.mxu0 0.0
        %474 = vmatpush1.msra.mxu0 0.0
        %475 = vmatprep.subr.mxu0 0.0
        %476 = vmatpush1.msra.mxu0 0.0
        %477 = vmatprep.subr.mxu0 0.0
        %478 = vmatpush1.msra.mxu0 0.0
        %479 = vmatprep.subr.mxu0 0.0
        %480 = vmatpush1.msra.mxu0 0.0
        %481 = vmatprep.subr.mxu0 0.0
        %482 = vmatpush1.msra.mxu0 0.0
        %483 = vmatprep.subr.mxu0 0.0
        %484 = vmatpush1.msra.mxu0 0.0
        %485 = vmatprep.subr.mxu0 0.0
        %486 = vmatpush1.msra.mxu0 0.0
        %487 = vmatprep.subr.mxu0 0.0
        %488 = vmatpush1.msra.mxu0 0.0
        %489 = vmatprep.subr.mxu0 0.0
        %490 = vmatpush1.msra.mxu0 0.0
        %491 = vmatprep.subr.mxu0 0.0
        %492 = vmatpush1.msra.mxu0 0.0
        %493 = vmatprep.subr.mxu0 0.0
        %494 = vmatpush1.msra.mxu0 0.0
        %495 = vmatprep.subr.mxu0 0.0
        %496 = vmatpush1.msra.mxu0 0.0
        %497 = vmatprep.subr.mxu0 0.0
        %498 = vmatpush1.msra.mxu0 0.0
        %499 = vmatprep.subr.mxu0 0.0
        %500 = vmatpush1.msra.mxu0 0.0
        %501 = vmatprep.subr.mxu0 0.0
        %502 = vmatpush1.msra.mxu0 0.0
        %503 = vmatprep.subr.mxu0 0.0
        %504 = vmatpush1.msra.mxu0 0.0
        %505 = vmatprep.mubr.f32.mxu0 0.0
        %506 = vmatmul.mubr.f32.gmra.mrb[0].mxu0 %v361
        %v507 = vpop.f32.mrb[0].mxu0
        %v508 = vadd.f32 0.0, %v507
        %v509 = vpop.f32.mrb[0].mxu0
        %510 = vdwg.mxu0
        %v511 = vld [vmem:[%s3] sm:$0xf]
        %v513 = vsel %vm363, %v511, 0
        %515 = vmatprep.subr.mxu0 0.0
        %516 = vmatpush1.msra.mxu0 %v513
        %517 = vmatprep.subr.mxu0 0.0
        %518 = vmatpush1.msra.mxu0 0.0
        %519 = vmatprep.subr.mxu0 0.0
        %520 = vmatpush1.msra.mxu0 0.0
        %521 = vmatprep.subr.mxu0 0.0
        %522 = vmatpush1.msra.mxu0 0.0
        %523 = vmatprep.subr.mxu0 0.0
        %524 = vmatpush1.msra.mxu0 0.0
        %525 = vmatprep.subr.mxu0 0.0
        %526 = vmatpush1.msra.mxu0 0.0
        %527 = vmatprep.subr.mxu0 0.0
        %528 = vmatpush1.msra.mxu0 0.0
        %529 = vmatprep.subr.mxu0 0.0
        %530 = vmatpush1.msra.mxu0 0.0
        %531 = vmatprep.subr.mxu0 0.0
        %532 = vmatpush1.msra.mxu0 0.0
        %533 = vmatprep.subr.mxu0 0.0
        %534 = vmatpush1.msra.mxu0 0.0
        %535 = vmatprep.subr.mxu0 0.0
        %536 = vmatpush1.msra.mxu0 0.0
        %537 = vmatprep.subr.mxu0 0.0
        %538 = vmatpush1.msra.mxu0 0.0
        %539 = vmatprep.subr.mxu0 0.0
        %540 = vmatpush1.msra.mxu0 0.0
        %541 = vmatprep.subr.mxu0 0.0
        %542 = vmatpush1.msra.mxu0 0.0
        %543 = vmatprep.subr.mxu0 0.0
        %544 = vmatpush1.msra.mxu0 0.0
        %545 = vmatprep.subr.mxu0 0.0
        %546 = vmatpush1.msra.mxu0 0.0
        %547 = vmatprep.subr.mxu0 0.0
        %548 = vmatpush1.msra.mxu0 0.0
        %549 = vmatprep.subr.mxu0 0.0
        %550 = vmatpush1.msra.mxu0 0.0
        %551 = vmatprep.subr.mxu0 0.0
        %552 = vmatpush1.msra.mxu0 0.0
        %553 = vmatprep.subr.mxu0 0.0
        %554 = vmatpush1.msra.mxu0 0.0
        %555 = vmatprep.subr.mxu0 0.0
        %556 = vmatpush1.msra.mxu0 0.0
        %557 = vmatprep.subr.mxu0 0.0
        %558 = vmatpush1.msra.mxu0 0.0
        %559 = vmatprep.subr.mxu0 0.0
        %560 = vmatpush1.msra.mxu0 0.0
        %561 = vmatprep.subr.mxu0 0.0
        %562 = vmatpush1.msra.mxu0 0.0
        %563 = vmatprep.subr.mxu0 0.0
        %564 = vmatpush1.msra.mxu0 0.0
        %565 = vmatprep.subr.mxu0 0.0
        %566 = vmatpush1.msra.mxu0 0.0
        %567 = vmatprep.subr.mxu0 0.0
        %568 = vmatpush1.msra.mxu0 0.0
        %569 = vmatprep.subr.mxu0 0.0
        %570 = vmatpush1.msra.mxu0 0.0
        %571 = vmatprep.subr.mxu0 0.0
        %572 = vmatpush1.msra.mxu0 0.0
        %573 = vmatprep.subr.mxu0 0.0
        %574 = vmatpush1.msra.mxu0 0.0
        %575 = vmatprep.subr.mxu0 0.0
        %576 = vmatpush1.msra.mxu0 0.0
        %577 = vmatprep.subr.mxu0 0.0
        %578 = vmatpush1.msra.mxu0 0.0
        %579 = vmatprep.mubr.f32.mxu0 0.0
        %580 = vmatmul.mubr.f32.gmra.mrb[0].mxu0 %v361
        %v581 = vpop.f32.mrb[0].mxu0
        %v582 = vadd.f32 0.0, %v581
        %v583 = vpop.f32.mrb[0].mxu0
        %584 = vdwg.mxu0
        %vm585 = vcmask 15360
        %v587 = vsel %vm585, %v434, 0
        %v590 = vsel %vm585, %v508, 0
        %592 = vmatprep.subr.mxu0 0.0
        %593 = vmatpush1.xpose.msra.mxu0 %v590
        %594 = vmatprep.subr.mxu0 0.0
        %595 = vmatpush1.xpose.msra.mxu0 0.0
        %596 = vmatprep.subr.mxu0 0.0
        %597 = vmatpush1.xpose.msra.mxu0 0.0
        %598 = vmatprep.subr.mxu0 0.0
        %599 = vmatpush1.xpose.msra.mxu0 0.0
        %600 = vmatprep.subr.mxu0 0.0
        %601 = vmatpush1.xpose.msra.mxu0 0.0
        %602 = vmatprep.subr.mxu0 0.0
        %603 = vmatpush1.xpose.msra.mxu0 0.0
        %604 = vmatprep.subr.mxu0 0.0
        %605 = vmatpush1.xpose.msra.mxu0 0.0
        %606 = vmatprep.subr.mxu0 0.0
        %607 = vmatpush1.xpose.msra.mxu0 0.0
        %608 = vmatprep.subr.mxu0 0.0
        %609 = vmatpush1.xpose.msra.mxu0 0.0
        %610 = vmatprep.subr.mxu0 0.0
        %611 = vmatpush1.xpose.msra.mxu0 0.0
        %612 = vmatprep.subr.mxu0 0.0
        %613 = vmatpush1.xpose.msra.mxu0 0.0
        %614 = vmatprep.subr.mxu0 0.0
        %615 = vmatpush1.xpose.msra.mxu0 0.0
        %616 = vmatprep.subr.mxu0 0.0
        %617 = vmatpush1.xpose.msra.mxu0 0.0
        %618 = vmatprep.subr.mxu0 0.0
        %619 = vmatpush1.xpose.msra.mxu0 0.0
        %620 = vmatprep.subr.mxu0 0.0
        %621 = vmatpush1.xpose.msra.mxu0 0.0
        %622 = vmatprep.subr.mxu0 0.0
        %623 = vmatpush1.xpose.msra.mxu0 0.0
        %624 = vmatprep.subr.mxu0 0.0
        %625 = vmatpush1.xpose.msra.mxu0 0.0
        %626 = vmatprep.subr.mxu0 0.0
        %627 = vmatpush1.xpose.msra.mxu0 0.0
        %628 = vmatprep.subr.mxu0 0.0
        %629 = vmatpush1.xpose.msra.mxu0 0.0
        %630 = vmatprep.subr.mxu0 0.0
        %631 = vmatpush1.xpose.msra.mxu0 0.0
        %632 = vmatprep.subr.mxu0 0.0
        %633 = vmatpush1.xpose.msra.mxu0 0.0
        %634 = vmatprep.subr.mxu0 0.0
        %635 = vmatpush1.xpose.msra.mxu0 0.0
        %636 = vmatprep.subr.mxu0 0.0
        %637 = vmatpush1.xpose.msra.mxu0 0.0
        %638 = vmatprep.subr.mxu0 0.0
        %639 = vmatpush1.xpose.msra.mxu0 0.0
        %640 = vmatprep.subr.mxu0 0.0
        %641 = vmatpush1.xpose.msra.mxu0 0.0
        %642 = vmatprep.subr.mxu0 0.0
        %643 = vmatpush1.xpose.msra.mxu0 0.0
        %644 = vmatprep.subr.mxu0 0.0
        %645 = vmatpush1.xpose.msra.mxu0 0.0
        %646 = vmatprep.subr.mxu0 0.0
        %647 = vmatpush1.xpose.msra.mxu0 0.0
        %648 = vmatprep.subr.mxu0 0.0
        %649 = vmatpush1.xpose.msra.mxu0 0.0
        %650 = vmatprep.subr.mxu0 0.0
        %651 = vmatpush1.xpose.msra.mxu0 0.0
        %652 = vmatprep.subr.mxu0 0.0
        %653 = vmatpush1.xpose.msra.mxu0 0.0
        %654 = vmatprep.subr.mxu0 0.0
        %655 = vmatpush1.xpose.msra.mxu0 0.0
        %656 = vmatprep.mubr.f32.mxu0 0.0
        %657 = vmatmul.mubr.f32.gmra.mrb[0].mxu0 %v587
        %v658 = vpop.f32.mrb[0].mxu0
        %v659 = vadd.f32 0.0, %v658
        %v660 = vpop.f32.mrb[0].mxu0
        %661 = vdwg.mxu0
        %v662 = vsel %vm357, %v659, -1e+30
        %vm663 = vcmask 64512
        %v664 = vsel %vm663, %v662, -inf
        %665 = vmax.xlane.f32.xlu0 %v664
        %v666 = vpop.xlane.xlu0 %665
        %v667 = vsub.f32 %v662, %v666
        %v668 = vmul.f32 %v667, 1.442695
        %v669 = vpow.pop %v668
        %v670 = vsel %vm663, %v669, 0.0
        %671 = vadd.xlane.f32.xlu0 %v670
        %v672 = vpop.xlane.xlu0 %671
        %v673 = vrcp.pop %v672
        %v674 = vmul.f32 %v669, %v673
        %v676 = vsel %vm663, %v674, 0
        %678 = vmatprep.subr.mxu0 0.0
        %679 = vmatpush1.msra.mxu0 %v582
        %680 = vmatprep.subr.mxu0 0.0
        %681 = vmatpush1.msra.mxu0 0.0
        %682 = vmatprep.subr.mxu0 0.0
        %683 = vmatpush1.msra.mxu0 0.0
        %684 = vmatprep.subr.mxu0 0.0
        %685 = vmatpush1.msra.mxu0 0.0
        %686 = vmatprep.subr.mxu0 0.0
        %687 = vmatpush1.msra.mxu0 0.0
        %688 = vmatprep.subr.mxu0 0.0
        %689 = vmatpush1.msra.mxu0 0.0
        %690 = vmatprep.subr.mxu0 0.0
        %691 = vmatpush1.msra.mxu0 0.0
        %692 = vmatprep.subr.mxu0 0.0
        %693 = vmatpush1.msra.mxu0 0.0
        %694 = vmatprep.subr.mxu0 0.0
        %695 = vmatpush1.msra.mxu0 0.0
        %696 = vmatprep.subr.mxu0 0.0
        %697 = vmatpush1.msra.mxu0 0.0
        %698 = vmatprep.subr.mxu0 0.0
        %699 = vmatpush1.msra.mxu0 0.0
        %700 = vmatprep.subr.mxu0 0.0
        %701 = vmatpush1.msra.mxu0 0.0
        %702 = vmatprep.subr.mxu0 0.0
        %703 = vmatpush1.msra.mxu0 0.0
        %704 = vmatprep.subr.mxu0 0.0
        %705 = vmatpush1.msra.mxu0 0.0
        %706 = vmatprep.subr.mxu0 0.0
        %707 = vmatpush1.msra.mxu0 0.0
        %708 = vmatprep.subr.mxu0 0.0
        %709 = vmatpush1.msra.mxu0 0.0
        %710 = vmatprep.subr.mxu0 0.0
        %711 = vmatpush1.msra.mxu0 0.0
        %712 = vmatprep.subr.mxu0 0.0
        %713 = vmatpush1.msra.mxu0 0.0
        %714 = vmatprep.subr.mxu0 0.0
        %715 = vmatpush1.msra.mxu0 0.0
        %716 = vmatprep.subr.mxu0 0.0
        %717 = vmatpush1.msra.mxu0 0.0
        %718 = vmatprep.subr.mxu0 0.0
        %719 = vmatpush1.msra.mxu0 0.0
        %720 = vmatprep.subr.mxu0 0.0
        %721 = vmatpush1.msra.mxu0 0.0
        %722 = vmatprep.subr.mxu0 0.0
        %723 = vmatpush1.msra.mxu0 0.0
        %724 = vmatprep.subr.mxu0 0.0
        %725 = vmatpush1.msra.mxu0 0.0
        %726 = vmatprep.subr.mxu0 0.0
        %727 = vmatpush1.msra.mxu0 0.0
        %728 = vmatprep.subr.mxu0 0.0
        %729 = vmatpush1.msra.mxu0 0.0
        %730 = vmatprep.subr.mxu0 0.0
        %731 = vmatpush1.msra.mxu0 0.0
        %732 = vmatprep.subr.mxu0 0.0
        %733 = vmatpush1.msra.mxu0 0.0
        %734 = vmatprep.subr.mxu0 0.0
        %735 = vmatpush1.msra.mxu0 0.0
        %736 = vmatprep.subr.mxu0 0.0
        %737 = vmatpush1.msra.mxu0 0.0
        %738 = vmatprep.subr.mxu0 0.0
        %739 = vmatpush1.msra.mxu0 0.0
        %740 = vmatprep.subr.mxu0 0.0
        %741 = vmatpush1.msra.mxu0 0.0
        %742 = vmatprep.mubr.f32.mxu0 0.0
        %743 = vmatmul.mubr.f32.gmra.mrb[0].mxu0 %v676
        %v744 = vpop.f32.mrb[0].mxu0
        %v745 = vadd.f32 0.0, %v744
        %v746 = vpop.f32.mrb[0].mxu0
        %747 = vdwg.mxu0
        %v748 = vld [vmem:[%s4] sm:$0x3]
        %s749 = scalar_lea.vmem %s1, 4
        %v750 = vld [vmem:[%s749] sm:$0xf]
        %v752 = vsel %vm363, %v750, 0
        %754 = vmatprep.subr.mxu0 0.0
        %755 = vmatpush1.msra.mxu0 %v752
        %756 = vmatprep.subr.mxu0 0.0
        %757 = vmatpush1.msra.mxu0 0.0
        %758 = vmatprep.subr.mxu0 0.0
        %759 = vmatpush1.msra.mxu0 0.0
        %760 = vmatprep.subr.mxu0 0.0
        %761 = vmatpush1.msra.mxu0 0.0
        %762 = vmatprep.subr.mxu0 0.0
        %763 = vmatpush1.msra.mxu0 0.0
        %764 = vmatprep.subr.mxu0 0.0
        %765 = vmatpush1.msra.mxu0 0.0
        %766 = vmatprep.subr.mxu0 0.0
        %767 = vmatpush1.msra.mxu0 0.0
        %768 = vmatprep.subr.mxu0 0.0
        %769 = vmatpush1.msra.mxu0 0.0
        %770 = vmatprep.subr.mxu0 0.0
        %771 = vmatpush1.msra.mxu0 0.0
        %772 = vmatprep.subr.mxu0 0.0
        %773 = vmatpush1.msra.mxu0 0.0
        %774 = vmatprep.subr.mxu0 0.0
        %775 = vmatpush1.msra.mxu0 0.0
        %776 = vmatprep.subr.mxu0 0.0
        %777 = vmatpush1.msra.mxu0 0.0
        %778 = vmatprep.subr.mxu0 0.0
        %779 = vmatpush1.msra.mxu0 0.0
        %780 = vmatprep.subr.mxu0 0.0
        %781 = vmatpush1.msra.mxu0 0.0
        %782 = vmatprep.subr.mxu0 0.0
        %783 = vmatpush1.msra.mxu0 0.0
        %784 = vmatprep.subr.mxu0 0.0
        %785 = vmatpush1.msra.mxu0 0.0
        %786 = vmatprep.subr.mxu0 0.0
        %787 = vmatpush1.msra.mxu0 0.0
        %788 = vmatprep.subr.mxu0 0.0
        %789 = vmatpush1.msra.mxu0 0.0
        %790 = vmatprep.subr.mxu0 0.0
        %791 = vmatpush1.msra.mxu0 0.0
        %792 = vmatprep.subr.mxu0 0.0
        %793 = vmatpush1.msra.mxu0 0.0
        %794 = vmatprep.subr.mxu0 0.0
        %795 = vmatpush1.msra.mxu0 0.0
        %796 = vmatprep.subr.mxu0 0.0
        %797 = vmatpush1.msra.mxu0 0.0
        %798 = vmatprep.subr.mxu0 0.0
        %799 = vmatpush1.msra.mxu0 0.0
        %800 = vmatprep.subr.mxu0 0.0
        %801 = vmatpush1.msra.mxu0 0.0
        %802 = vmatprep.subr.mxu0 0.0
        %803 = vmatpush1.msra.mxu0 0.0
        %804 = vmatprep.subr.mxu0 0.0
        %805 = vmatpush1.msra.mxu0 0.0
        %806 = vmatprep.subr.mxu0 0.0
        %807 = vmatpush1.msra.mxu0 0.0
        %808 = vmatprep.subr.mxu0 0.0
        %809 = vmatpush1.msra.mxu0 0.0
        %810 = vmatprep.subr.mxu0 0.0
        %811 = vmatpush1.msra.mxu0 0.0
        %812 = vmatprep.subr.mxu0 0.0
        %813 = vmatpush1.msra.mxu0 0.0
        %814 = vmatprep.subr.mxu0 0.0
        %815 = vmatpush1.msra.mxu0 0.0
        %816 = vmatprep.subr.mxu0 0.0
        %817 = vmatpush1.msra.mxu0 0.0
        %818 = vmatprep.mubr.f32.mxu0 0.0
        %819 = vmatmul.mubr.f32.gmra.mrb[0].mxu0 %v361
        %v820 = vpop.f32.mrb[0].mxu0
        %v821 = vadd.f32 0.0, %v820
        %v822 = vpop.f32.mrb[0].mxu0
        %823 = vdwg.mxu0
        %s824 = scalar_lea.vmem %s2, 4
        %v825 = vld [vmem:[%s824] sm:$0xf]
        %v827 = vsel %vm363, %v825, 0
        %829 = vmatprep.subr.mxu0 0.0
        %830 = vmatpush1.msra.mxu0 %v827
        %831 = vmatprep.subr.mxu0 0.0
        %832 = vmatpush1.msra.mxu0 0.0
        %833 = vmatprep.subr.mxu0 0.0
        %834 = vmatpush1.msra.mxu0 0.0
        %835 = vmatprep.subr.mxu0 0.0
        %836 = vmatpush1.msra.mxu0 0.0
        %837 = vmatprep.subr.mxu0 0.0
        %838 = vmatpush1.msra.mxu0 0.0
        %839 = vmatprep.subr.mxu0 0.0
        %840 = vmatpush1.msra.mxu0 0.0
        %841 = vmatprep.subr.mxu0 0.0
        %842 = vmatpush1.msra.mxu0 0.0
        %843 = vmatprep.subr.mxu0 0.0
        %844 = vmatpush1.msra.mxu0 0.0
        %845 = vmatprep.subr.mxu0 0.0
        %846 = vmatpush1.msra.mxu0 0.0
        %847 = vmatprep.subr.mxu0 0.0
        %848 = vmatpush1.msra.mxu0 0.0
        %849 = vmatprep.subr.mxu0 0.0
        %850 = vmatpush1.msra.mxu0 0.0
        %851 = vmatprep.subr.mxu0 0.0
        %852 = vmatpush1.msra.mxu0 0.0
        %853 = vmatprep.subr.mxu0 0.0
        %854 = vmatpush1.msra.mxu0 0.0
        %855 = vmatprep.subr.mxu0 0.0
        %856 = vmatpush1.msra.mxu0 0.0
        %857 = vmatprep.subr.mxu0 0.0
        %858 = vmatpush1.msra.mxu0 0.0
        %859 = vmatprep.subr.mxu0 0.0
        %860 = vmatpush1.msra.mxu0 0.0
        %861 = vmatprep.subr.mxu0 0.0
        %862 = vmatpush1.msra.mxu0 0.0
        %863 = vmatprep.subr.mxu0 0.0
        %864 = vmatpush1.msra.mxu0 0.0
        %865 = vmatprep.subr.mxu0 0.0
        %866 = vmatpush1.msra.mxu0 0.0
        %867 = vmatprep.subr.mxu0 0.0
        %868 = vmatpush1.msra.mxu0 0.0
        %869 = vmatprep.subr.mxu0 0.0
        %870 = vmatpush1.msra.mxu0 0.0
        %871 = vmatprep.subr.mxu0 0.0
        %872 = vmatpush1.msra.mxu0 0.0
        %873 = vmatprep.subr.mxu0 0.0
        %874 = vmatpush1.msra.mxu0 0.0
        %875 = vmatprep.subr.mxu0 0.0
        %876 = vmatpush1.msra.mxu0 0.0
        %877 = vmatprep.subr.mxu0 0.0
        %878 = vmatpush1.msra.mxu0 0.0
        %879 = vmatprep.subr.mxu0 0.0
        %880 = vmatpush1.msra.mxu0 0.0
        %881 = vmatprep.subr.mxu0 0.0
        %882 = vmatpush1.msra.mxu0 0.0
        %883 = vmatprep.subr.mxu0 0.0
        %884 = vmatpush1.msra.mxu0 0.0
        %885 = vmatprep.subr.mxu0 0.0
        %886 = vmatpush1.msra.mxu0 0.0
        %887 = vmatprep.subr.mxu0 0.0
        %888 = vmatpush1.msra.mxu0 0.0
        %889 = vmatprep.subr.mxu0 0.0
        %890 = vmatpush1.msra.mxu0 0.0
        %891 = vmatprep.subr.mxu0 0.0
        %892 = vmatpush1.msra.mxu0 0.0
        %893 = vmatprep.mubr.f32.mxu0 0.0
        %894 = vmatmul.mubr.f32.gmra.mrb[0].mxu0 %v361
        %v895 = vpop.f32.mrb[0].mxu0
        %v896 = vadd.f32 0.0, %v895
        %v897 = vpop.f32.mrb[0].mxu0
        %898 = vdwg.mxu0
        %s899 = scalar_lea.vmem %s3, 4
        %v900 = vld [vmem:[%s899] sm:$0xf]
        %v902 = vsel %vm363, %v900, 0
        %904 = vmatprep.subr.mxu0 0.0
        %905 = vmatpush1.msra.mxu0 %v902
        %906 = vmatprep.subr.mxu0 0.0
        %907 = vmatpush1.msra.mxu0 0.0
        %908 = vmatprep.subr.mxu0 0.0
        %909 = vmatpush1.msra.mxu0 0.0
        %910 = vmatprep.subr.mxu0 0.0
        %911 = vmatpush1.msra.mxu0 0.0
        %912 = vmatprep.subr.mxu0 0.0
        %913 = vmatpush1.msra.mxu0 0.0
        %914 = vmatprep.subr.mxu0 0.0
        %915 = vmatpush1.msra.mxu0 0.0
        %916 = vmatprep.subr.mxu0 0.0
        %917 = vmatpush1.msra.mxu0 0.0
        %918 = vmatprep.subr.mxu0 0.0
        %919 = vmatpush1.msra.mxu0 0.0
        %920 = vmatprep.subr.mxu0 0.0
        %921 = vmatpush1.msra.mxu0 0.0
        %922 = vmatprep.subr.mxu0 0.0
        %923 = vmatpush1.msra.mxu0 0.0
        %924 = vmatprep.subr.mxu0 0.0
        %925 = vmatpush1.msra.mxu0 0.0
        %926 = vmatprep.subr.mxu0 0.0
        %927 = vmatpush1.msra.mxu0 0.0
        %928 = vmatprep.subr.mxu0 0.0
        %929 = vmatpush1.msra.mxu0 0.0
        %930 = vmatprep.subr.mxu0 0.0
        %931 = vmatpush1.msra.mxu0 0.0
        %932 = vmatprep.subr.mxu0 0.0
        %933 = vmatpush1.msra.mxu0 0.0
        %934 = vmatprep.subr.mxu0 0.0
        %935 = vmatpush1.msra.mxu0 0.0
        %936 = vmatprep.subr.mxu0 0.0
        %937 = vmatpush1.msra.mxu0 0.0
        %938 = vmatprep.subr.mxu0 0.0
        %939 = vmatpush1.msra.mxu0 0.0
        %940 = vmatprep.subr.mxu0 0.0
        %941 = vmatpush1.msra.mxu0 0.0
        %942 = vmatprep.subr.mxu0 0.0
        %943 = vmatpush1.msra.mxu0 0.0
        %944 = vmatprep.subr.mxu0 0.0
        %945 = vmatpush1.msra.mxu0 0.0
        %946 = vmatprep.subr.mxu0 0.0
        %947 = vmatpush1.msra.mxu0 0.0
        %948 = vmatprep.subr.mxu0 0.0
        %949 = vmatpush1.msra.mxu0 0.0
        %950 = vmatprep.subr.mxu0 0.0
        %951 = vmatpush1.msra.mxu0 0.0
        %952 = vmatprep.subr.mxu0 0.0
        %953 = vmatpush1.msra.mxu0 0.0
        %954 = vmatprep.subr.mxu0 0.0
        %955 = vmatpush1.msra.mxu0 0.0
        %956 = vmatprep.subr.mxu0 0.0
        %957 = vmatpush1.msra.mxu0 0.0
        %958 = vmatprep.subr.mxu0 0.0
        %959 = vmatpush1.msra.mxu0 0.0
        %960 = vmatprep.subr.mxu0 0.0
        %961 = vmatpush1.msra.mxu0 0.0
        %962 = vmatprep.subr.mxu0 0.0
        %963 = vmatpush1.msra.mxu0 0.0
        %964 = vmatprep.subr.mxu0 0.0
        %965 = vmatpush1.msra.mxu0 0.0
        %966 = vmatprep.subr.mxu0 0.0
        %967 = vmatpush1.msra.mxu0 0.0
        %968 = vmatprep.mubr.f32.mxu0 0.0
        %969 = vmatmul.mubr.f32.gmra.mrb[0].mxu0 %v361
        %v970 = vpop.f32.mrb[0].mxu0
        %v971 = vadd.f32 0.0, %v970
        %v972 = vpop.f32.mrb[0].mxu0
        %973 = vdwg.mxu0
        %v975 = vsel %vm585, %v821, 0
        %v978 = vsel %vm585, %v896, 0
        %980 = vmatprep.subr.mxu0 0.0
        %981 = vmatpush1.xpose.msra.mxu0 %v978
        %982 = vmatprep.subr.mxu0 0.0
        %983 = vmatpush1.xpose.msra.mxu0 0.0
        %984 = vmatprep.subr.mxu0 0.0
        %985 = vmatpush1.xpose.msra.mxu0 0.0
        %986 = vmatprep.subr.mxu0 0.0
        %987 = vmatpush1.xpose.msra.mxu0 0.0
        %988 = vmatprep.subr.mxu0 0.0
        %989 = vmatpush1.xpose.msra.mxu0 0.0
        %990 = vmatprep.subr.mxu0 0.0
        %991 = vmatpush1.xpose.msra.mxu0 0.0
        %992 = vmatprep.subr.mxu0 0.0
        %993 = vmatpush1.xpose.msra.mxu0 0.0
        %994 = vmatprep.subr.mxu0 0.0
        %995 = vmatpush1.xpose.msra.mxu0 0.0
        %996 = vmatprep.subr.mxu0 0.0
        %997 = vmatpush1.xpose.msra.mxu0 0.0
        %998 = vmatprep.subr.mxu0 0.0
        %999 = vmatpush1.xpose.msra.mxu0 0.0
        %1000 = vmatprep.subr.mxu0 0.0
        %1001 = vmatpush1.xpose.msra.mxu0 0.0
        %1002 = vmatprep.subr.mxu0 0.0
        %1003 = vmatpush1.xpose.msra.mxu0 0.0
        %1004 = vmatprep.subr.mxu0 0.0
        %1005 = vmatpush1.xpose.msra.mxu0 0.0
        %1006 = vmatprep.subr.mxu0 0.0
        %1007 = vmatpush1.xpose.msra.mxu0 0.0
        %1008 = vmatprep.subr.mxu0 0.0
        %1009 = vmatpush1.xpose.msra.mxu0 0.0
        %1010 = vmatprep.subr.mxu0 0.0
        %1011 = vmatpush1.xpose.msra.mxu0 0.0
        %1012 = vmatprep.subr.mxu0 0.0
        %1013 = vmatpush1.xpose.msra.mxu0 0.0
        %1014 = vmatprep.subr.mxu0 0.0
        %1015 = vmatpush1.xpose.msra.mxu0 0.0
        %1016 = vmatprep.subr.mxu0 0.0
        %1017 = vmatpush1.xpose.msra.mxu0 0.0
        %1018 = vmatprep.subr.mxu0 0.0
        %1019 = vmatpush1.xpose.msra.mxu0 0.0
        %1020 = vmatprep.subr.mxu0 0.0
        %1021 = vmatpush1.xpose.msra.mxu0 0.0
        %1022 = vmatprep.subr.mxu0 0.0
        %1023 = vmatpush1.xpose.msra.mxu0 0.0
        %1024 = vmatprep.subr.mxu0 0.0
        %1025 = vmatpush1.xpose.msra.mxu0 0.0
        %1026 = vmatprep.subr.mxu0 0.0
        %1027 = vmatpush1.xpose.msra.mxu0 0.0
        %1028 = vmatprep.subr.mxu0 0.0
        %1029 = vmatpush1.xpose.msra.mxu0 0.0
        %1030 = vmatprep.subr.mxu0 0.0
        %1031 = vmatpush1.xpose.msra.mxu0 0.0
        %1032 = vmatprep.subr.mxu0 0.0
        %1033 = vmatpush1.xpose.msra.mxu0 0.0
        %1034 = vmatprep.subr.mxu0 0.0
        %1035 = vmatpush1.xpose.msra.mxu0 0.0
        %1036 = vmatprep.subr.mxu0 0.0
        %1037 = vmatpush1.xpose.msra.mxu0 0.0
        %1038 = vmatprep.subr.mxu0 0.0
        %1039 = vmatpush1.xpose.msra.mxu0 0.0
        %1040 = vmatprep.subr.mxu0 0.0
        %1041 = vmatpush1.xpose.msra.mxu0 0.0
        %1042 = vmatprep.subr.mxu0 0.0
        %1043 = vmatpush1.xpose.msra.mxu0 0.0
        %1044 = vmatprep.mubr.f32.mxu0 0.0
        %1045 = vmatmul.mubr.f32.gmra.mrb[0].mxu0 %v975
        %v1046 = vpop.f32.mrb[0].mxu0
        %v1047 = vadd.f32 0.0, %v1046
        %v1048 = vpop.f32.mrb[0].mxu0
        %1049 = vdwg.mxu0
        %v1050 = vsel %vm357, %v1047, -1e+30
        %v1051 = vsel %vm663, %v1050, -inf
        %1052 = vmax.xlane.f32.xlu0 %v1051
        %v1053 = vpop.xlane.xlu0 %1052
        %v1054 = vsub.f32 %v1050, %v1053
        %v1055 = vmul.f32 %v1054, 1.442695
        %v1056 = vpow.pop %v1055
        %v1057 = vsel %vm663, %v1056, 0.0
        %1058 = vadd.xlane.f32.xlu0 %v1057
        %v1059 = vpop.xlane.xlu0 %1058
        %v1060 = vrcp.pop %v1059
        %v1061 = vmul.f32 %v1056, %v1060
        %v1063 = vsel %vm663, %v1061, 0
        %1065 = vmatprep.subr.mxu0 0.0
        %1066 = vmatpush1.msra.mxu0 %v971
        %1067 = vmatprep.subr.mxu0 0.0
        %1068 = vmatpush1.msra.mxu0 0.0
        %1069 = vmatprep.subr.mxu0 0.0
        %1070 = vmatpush1.msra.mxu0 0.0
        %1071 = vmatprep.subr.mxu0 0.0
        %1072 = vmatpush1.msra.mxu0 0.0
        %1073 = vmatprep.subr.mxu0 0.0
        %1074 = vmatpush1.msra.mxu0 0.0
        %1075 = vmatprep.subr.mxu0 0.0
        %1076 = vmatpush1.msra.mxu0 0.0
        %1077 = vmatprep.subr.mxu0 0.0
        %1078 = vmatpush1.msra.mxu0 0.0
        %1079 = vmatprep.subr.mxu0 0.0
        %1080 = vmatpush1.msra.mxu0 0.0
        %1081 = vmatprep.subr.mxu0 0.0
        %1082 = vmatpush1.msra.mxu0 0.0
        %1083 = vmatprep.subr.mxu0 0.0
        %1084 = vmatpush1.msra.mxu0 0.0
        %1085 = vmatprep.subr.mxu0 0.0
        %1086 = vmatpush1.msra.mxu0 0.0
        %1087 = vmatprep.subr.mxu0 0.0
        %1088 = vmatpush1.msra.mxu0 0.0
        %1089 = vmatprep.subr.mxu0 0.0
        %1090 = vmatpush1.msra.mxu0 0.0
        %1091 = vmatprep.subr.mxu0 0.0
        %1092 = vmatpush1.msra.mxu0 0.0
        %1093 = vmatprep.subr.mxu0 0.0
        %1094 = vmatpush1.msra.mxu0 0.0
        %1095 = vmatprep.subr.mxu0 0.0
        %1096 = vmatpush1.msra.mxu0 0.0
        %1097 = vmatprep.subr.mxu0 0.0
        %1098 = vmatpush1.msra.mxu0 0.0
        %1099 = vmatprep.subr.mxu0 0.0
        %1100 = vmatpush1.msra.mxu0 0.0
        %1101 = vmatprep.subr.mxu0 0.0
        %1102 = vmatpush1.msra.mxu0 0.0
        %1103 = vmatprep.subr.mxu0 0.0
        %1104 = vmatpush1.msra.mxu0 0.0
        %1105 = vmatprep.subr.mxu0 0.0
        %1106 = vmatpush1.msra.mxu0 0.0
        %1107 = vmatprep.subr.mxu0 0.0
        %1108 = vmatpush1.msra.mxu0 0.0
        %1109 = vmatprep.subr.mxu0 0.0
        %1110 = vmatpush1.msra.mxu0 0.0
        %1111 = vmatprep.subr.mxu0 0.0
        %1112 = vmatpush1.msra.mxu0 0.0
        %1113 = vmatprep.subr.mxu0 0.0
        %1114 = vmatpush1.msra.mxu0 0.0
        %1115 = vmatprep.subr.mxu0 0.0
        %1116 = vmatpush1.msra.mxu0 0.0
        %1117 = vmatprep.subr.mxu0 0.0
        %1118 = vmatpush1.msra.mxu0 0.0
        %1119 = vmatprep.subr.mxu0 0.0
        %1120 = vmatpush1.msra.mxu0 0.0
        %1121 = vmatprep.subr.mxu0 0.0
        %1122 = vmatpush1.msra.mxu0 0.0
        %1123 = vmatprep.subr.mxu0 0.0
        %1124 = vmatpush1.msra.mxu0 0.0
        %1125 = vmatprep.subr.mxu0 0.0
        %1126 = vmatpush1.msra.mxu0 0.0
        %1127 = vmatprep.subr.mxu0 0.0
        %1128 = vmatpush1.msra.mxu0 0.0
        %1129 = vmatprep.mubr.f32.mxu0 0.0
        %1130 = vmatmul.mubr.f32.gmra.mrb[0].mxu0 %v1063
        %v1131 = vpop.f32.mrb[0].mxu0
        %v1132 = vadd.f32 0.0, %v1131
        %v1133 = vpop.f32.mrb[0].mxu0
        %1134 = vdwg.mxu0
        %s1135 = scalar_lea.vmem %s4, 2
        %v1136 = vld [vmem:[%s1135] sm:$0x3]
        %v1138 = vsel %vm585, %v1132, 0
        %vm1140 = vcmask 1041408
        %v1142 = vsel %vm1140, %v1136, 0
        %1144 = vmatprep.subr.mxu0 0.0
        %1145 = vmatpush1.msra.mxu0 %v1142
        %1146 = vmatprep.subr.mxu0 0.0
        %1147 = vmatpush1.msra.mxu0 0.0
        %1148 = vmatprep.subr.mxu0 0.0
        %1149 = vmatpush1.msra.mxu0 0.0
        %1150 = vmatprep.subr.mxu0 0.0
        %1151 = vmatpush1.msra.mxu0 0.0
        %1152 = vmatprep.subr.mxu0 0.0
        %1153 = vmatpush1.msra.mxu0 0.0
        %1154 = vmatprep.subr.mxu0 0.0
        %1155 = vmatpush1.msra.mxu0 0.0
        %1156 = vmatprep.subr.mxu0 0.0
        %1157 = vmatpush1.msra.mxu0 0.0
        %1158 = vmatprep.subr.mxu0 0.0
        %1159 = vmatpush1.msra.mxu0 0.0
        %1160 = vmatprep.subr.mxu0 0.0
        %1161 = vmatpush1.msra.mxu0 0.0
        %1162 = vmatprep.subr.mxu0 0.0
        %1163 = vmatpush1.msra.mxu0 0.0
        %1164 = vmatprep.subr.mxu0 0.0
        %1165 = vmatpush1.msra.mxu0 0.0
        %1166 = vmatprep.subr.mxu0 0.0
        %1167 = vmatpush1.msra.mxu0 0.0
        %1168 = vmatprep.subr.mxu0 0.0
        %1169 = vmatpush1.msra.mxu0 0.0
        %1170 = vmatprep.subr.mxu0 0.0
        %1171 = vmatpush1.msra.mxu0 0.0
        %1172 = vmatprep.subr.mxu0 0.0
        %1173 = vmatpush1.msra.mxu0 0.0
        %1174 = vmatprep.subr.mxu0 0.0
        %1175 = vmatpush1.msra.mxu0 0.0
        %1176 = vmatprep.subr.mxu0 0.0
        %1177 = vmatpush1.msra.mxu0 0.0
        %1178 = vmatprep.subr.mxu0 0.0
        %1179 = vmatpush1.msra.mxu0 0.0
        %1180 = vmatprep.subr.mxu0 0.0
        %1181 = vmatpush1.msra.mxu0 0.0
        %1182 = vmatprep.subr.mxu0 0.0
        %1183 = vmatpush1.msra.mxu0 0.0
        %1184 = vmatprep.subr.mxu0 0.0
        %1185 = vmatpush1.msra.mxu0 0.0
        %1186 = vmatprep.subr.mxu0 0.0
        %1187 = vmatpush1.msra.mxu0 0.0
        %1188 = vmatprep.subr.mxu0 0.0
        %1189 = vmatpush1.msra.mxu0 0.0
        %1190 = vmatprep.subr.mxu0 0.0
        %1191 = vmatpush1.msra.mxu0 0.0
        %1192 = vmatprep.subr.mxu0 0.0
        %1193 = vmatpush1.msra.mxu0 0.0
        %1194 = vmatprep.subr.mxu0 0.0
        %1195 = vmatpush1.msra.mxu0 0.0
        %1196 = vmatprep.subr.mxu0 0.0
        %1197 = vmatpush1.msra.mxu0 0.0
        %1198 = vmatprep.subr.mxu0 0.0
        %1199 = vmatpush1.msra.mxu0 0.0
        %1200 = vmatprep.subr.mxu0 0.0
        %1201 = vmatpush1.msra.mxu0 0.0
        %1202 = vmatprep.subr.mxu0 0.0
        %1203 = vmatpush1.msra.mxu0 0.0
        %1204 = vmatprep.subr.mxu0 0.0
        %1205 = vmatpush1.msra.mxu0 0.0
        %1206 = vmatprep.subr.mxu0 0.0
        %1207 = vmatpush1.msra.mxu0 0.0
        %1208 = vmatprep.mubr.f32.mxu0 0.0
        %1209 = vmatmul.mubr.f32.gmra.mrb[0].mxu0 %v1138
        %v1210 = vpop.f32.mrb[0].mxu0
        %v1211 = vadd.f32 0.0, %v1210
        %v1212 = vpop.f32.mrb[0].mxu0
        %1213 = vdwg.mxu0
        %v1215 = vsel %vm585, %v745, 0
        %v1218 = vsel %vm1140, %v748, 0
        %1220 = vmatprep.subr.mxu0 0.0
        %1221 = vmatpush1.msra.mxu0 %v1218
        %1222 = vmatprep.subr.mxu0 0.0
        %1223 = vmatpush1.msra.mxu0 0.0
        %1224 = vmatprep.subr.mxu0 0.0
        %1225 = vmatpush1.msra.mxu0 0.0
        %1226 = vmatprep.subr.mxu0 0.0
        %1227 = vmatpush1.msra.mxu0 0.0
        %1228 = vmatprep.subr.mxu0 0.0
        %1229 = vmatpush1.msra.mxu0 0.0
        %1230 = vmatprep.subr.mxu0 0.0
        %1231 = vmatpush1.msra.mxu0 0.0
        %1232 = vmatprep.subr.mxu0 0.0
        %1233 = vmatpush1.msra.mxu0 0.0
        %1234 = vmatprep.subr.mxu0 0.0
        %1235 = vmatpush1.msra.mxu0 0.0
        %1236 = vmatprep.subr.mxu0 0.0
        %1237 = vmatpush1.msra.mxu0 0.0
        %1238 = vmatprep.subr.mxu0 0.0
        %1239 = vmatpush1.msra.mxu0 0.0
        %1240 = vmatprep.subr.mxu0 0.0
        %1241 = vmatpush1.msra.mxu0 0.0
        %1242 = vmatprep.subr.mxu0 0.0
        %1243 = vmatpush1.msra.mxu0 0.0
        %1244 = vmatprep.subr.mxu0 0.0
        %1245 = vmatpush1.msra.mxu0 0.0
        %1246 = vmatprep.subr.mxu0 0.0
        %1247 = vmatpush1.msra.mxu0 0.0
        %1248 = vmatprep.subr.mxu0 0.0
        %1249 = vmatpush1.msra.mxu0 0.0
        %1250 = vmatprep.subr.mxu0 0.0
        %1251 = vmatpush1.msra.mxu0 0.0
        %1252 = vmatprep.subr.mxu0 0.0
        %1253 = vmatpush1.msra.mxu0 0.0
        %1254 = vmatprep.subr.mxu0 0.0
        %1255 = vmatpush1.msra.mxu0 0.0
        %1256 = vmatprep.subr.mxu0 0.0
        %1257 = vmatpush1.msra.mxu0 0.0
        %1258 = vmatprep.subr.mxu0 0.0
        %1259 = vmatpush1.msra.mxu0 0.0
        %1260 = vmatprep.subr.mxu0 0.0
        %1261 = vmatpush1.msra.mxu0 0.0
        %1262 = vmatprep.subr.mxu0 0.0
        %1263 = vmatpush1.msra.mxu0 0.0
        %1264 = vmatprep.subr.mxu0 0.0
        %1265 = vmatpush1.msra.mxu0 0.0
        %1266 = vmatprep.subr.mxu0 0.0
        %1267 = vmatpush1.msra.mxu0 0.0
        %1268 = vmatprep.subr.mxu0 0.0
        %1269 = vmatpush1.msra.mxu0 0.0
        %1270 = vmatprep.subr.mxu0 0.0
        %1271 = vmatpush1.msra.mxu0 0.0
        %1272 = vmatprep.subr.mxu0 0.0
        %1273 = vmatpush1.msra.mxu0 0.0
        %1274 = vmatprep.subr.mxu0 0.0
        %1275 = vmatpush1.msra.mxu0 0.0
        %1276 = vmatprep.subr.mxu0 0.0
        %1277 = vmatpush1.msra.mxu0 0.0
        %1278 = vmatprep.subr.mxu0 0.0
        %1279 = vmatpush1.msra.mxu0 0.0
        %1280 = vmatprep.subr.mxu0 0.0
        %1281 = vmatpush1.msra.mxu0 0.0
        %1282 = vmatprep.subr.mxu0 0.0
        %1283 = vmatpush1.msra.mxu0 0.0
        %1284 = vmatprep.mubr.f32.mxu0 0.0
        %1285 = vmatmul.mubr.f32.gmra.mrb[0].mxu0 %v1215
        %v1286 = vpop.f32.mrb[0].mxu0
        %v1287 = vadd.f32 %v1211, %v1286
        %v1288 = vpop.f32.mrb[0].mxu0
        %1289 = vdwg.mxu0
        %v1290 = vmul.f32 %v354, 2.0
        %v1291 = vadd.f32 %v1290, %v1287
        %v1292 = vld [vmem:[%s5] sm:$0x1]
        %v1294 = vlaneseq
        %v1295 = vshrl.u32 %v1294, 7
        %v1296 = vsub.s32 0, %v1295
        %v1297 = vrot.slane %v1292, %v1296
        %v1299 = vadd.f32 %v1291, %v1297
        %v1300 = vld [vmem:[%s6] sm:$0xf]
        %v1301 = vld [vmem:[%s7] sm:$0x1]
        %v1303 = vlaneseq
        %v1304 = vshrl.u32 %v1303, 7
        %v1305 = vsub.s32 0, %v1304
        %v1306 = vrot.slane %v1301, %v1305
        %v1309 = vsel %vm359, %v1299, 0
        %v1312 = vsel %vm363, %v1300, 0
        %1314 = vmatprep.subr.mxu0 0.0
        %1315 = vmatpush1.msra.mxu0 %v1312
        %1316 = vmatprep.subr.mxu0 0.0
        %1317 = vmatpush1.msra.mxu0 0.0
        %1318 = vmatprep.subr.mxu0 0.0
        %1319 = vmatpush1.msra.mxu0 0.0
        %1320 = vmatprep.subr.mxu0 0.0
        %1321 = vmatpush1.msra.mxu0 0.0
        %1322 = vmatprep.subr.mxu0 0.0
        %1323 = vmatpush1.msra.mxu0 0.0
        %1324 = vmatprep.subr.mxu0 0.0
        %1325 = vmatpush1.msra.mxu0 0.0
        %1326 = vmatprep.subr.mxu0 0.0
        %1327 = vmatpush1.msra.mxu0 0.0
        %1328 = vmatprep.subr.mxu0 0.0
        %1329 = vmatpush1.msra.mxu0 0.0
        %1330 = vmatprep.subr.mxu0 0.0
        %1331 = vmatpush1.msra.mxu0 0.0
        %1332 = vmatprep.subr.mxu0 0.0
        %1333 = vmatpush1.msra.mxu0 0.0
        %1334 = vmatprep.subr.mxu0 0.0
        %1335 = vmatpush1.msra.mxu0 0.0
        %1336 = vmatprep.subr.mxu0 0.0
        %1337 = vmatpush1.msra.mxu0 0.0
        %1338 = vmatprep.subr.mxu0 0.0
        %1339 = vmatpush1.msra.mxu0 0.0
        %1340 = vmatprep.subr.mxu0 0.0
        %1341 = vmatpush1.msra.mxu0 0.0
        %1342 = vmatprep.subr.mxu0 0.0
        %1343 = vmatpush1.msra.mxu0 0.0
        %1344 = vmatprep.subr.mxu0 0.0
        %1345 = vmatpush1.msra.mxu0 0.0
        %1346 = vmatprep.subr.mxu0 0.0
        %1347 = vmatpush1.msra.mxu0 0.0
        %1348 = vmatprep.subr.mxu0 0.0
        %1349 = vmatpush1.msra.mxu0 0.0
        %1350 = vmatprep.subr.mxu0 0.0
        %1351 = vmatpush1.msra.mxu0 0.0
        %1352 = vmatprep.subr.mxu0 0.0
        %1353 = vmatpush1.msra.mxu0 0.0
        %1354 = vmatprep.subr.mxu0 0.0
        %1355 = vmatpush1.msra.mxu0 0.0
        %1356 = vmatprep.subr.mxu0 0.0
        %1357 = vmatpush1.msra.mxu0 0.0
        %1358 = vmatprep.subr.mxu0 0.0
        %1359 = vmatpush1.msra.mxu0 0.0
        %1360 = vmatprep.subr.mxu0 0.0
        %1361 = vmatpush1.msra.mxu0 0.0
        %1362 = vmatprep.subr.mxu0 0.0
        %1363 = vmatpush1.msra.mxu0 0.0
        %1364 = vmatprep.subr.mxu0 0.0
        %1365 = vmatpush1.msra.mxu0 0.0
        %1366 = vmatprep.subr.mxu0 0.0
        %1367 = vmatpush1.msra.mxu0 0.0
        %1368 = vmatprep.subr.mxu0 0.0
        %1369 = vmatpush1.msra.mxu0 0.0
        %1370 = vmatprep.subr.mxu0 0.0
        %1371 = vmatpush1.msra.mxu0 0.0
        %1372 = vmatprep.subr.mxu0 0.0
        %1373 = vmatpush1.msra.mxu0 0.0
        %1374 = vmatprep.subr.mxu0 0.0
        %1375 = vmatpush1.msra.mxu0 0.0
        %1376 = vmatprep.subr.mxu0 0.0
        %1377 = vmatpush1.msra.mxu0 0.0
        %1378 = vmatprep.mubr.f32.mxu0 0.0
        %1379 = vmatmul.mubr.f32.gmra.mrb[0].mxu0 %v1309
        %v1380 = vpop.f32.mrb[0].mxu0
        %v1381 = vadd.f32 %v1306, %v1380
        %v1382 = vpop.f32.mrb[0].mxu0
        %1383 = vdwg.mxu0
        %v1384 = vmax.f32 %v1381, 0.0
        %v1385 = vld [vmem:[%s8] sm:$0xff]
        %v1386 = vld [vmem:[%s9] sm:$0x1]
        %v1388 = vlaneseq
        %v1389 = vshrl.u32 %v1388, 7
        %v1390 = vsub.s32 0, %v1389
        %v1391 = vrot.slane %v1386, %v1390
        %v1394 = vsel %vm663, %v1384, 0
        %1396 = vmatprep.subr.mxu0 0.0
        %1397 = vmatpush1.msra.mxu0 %v1385
        %1398 = vmatprep.subr.mxu0 0.0
        %1399 = vmatpush1.msra.mxu0 0.0
        %1400 = vmatprep.subr.mxu0 0.0
        %1401 = vmatpush1.msra.mxu0 0.0
        %1402 = vmatprep.subr.mxu0 0.0
        %1403 = vmatpush1.msra.mxu0 0.0
        %1404 = vmatprep.subr.mxu0 0.0
        %1405 = vmatpush1.msra.mxu0 0.0
        %1406 = vmatprep.subr.mxu0 0.0
        %1407 = vmatpush1.msra.mxu0 0.0
        %1408 = vmatprep.subr.mxu0 0.0
        %1409 = vmatpush1.msra.mxu0 0.0
        %1410 = vmatprep.subr.mxu0 0.0
        %1411 = vmatpush1.msra.mxu0 0.0
        %1412 = vmatprep.subr.mxu0 0.0
        %1413 = vmatpush1.msra.mxu0 0.0
        %1414 = vmatprep.subr.mxu0 0.0
        %1415 = vmatpush1.msra.mxu0 0.0
        %1416 = vmatprep.subr.mxu0 0.0
        %1417 = vmatpush1.msra.mxu0 0.0
        %1418 = vmatprep.subr.mxu0 0.0
        %1419 = vmatpush1.msra.mxu0 0.0
        %1420 = vmatprep.subr.mxu0 0.0
        %1421 = vmatpush1.msra.mxu0 0.0
        %1422 = vmatprep.subr.mxu0 0.0
        %1423 = vmatpush1.msra.mxu0 0.0
        %1424 = vmatprep.subr.mxu0 0.0
        %1425 = vmatpush1.msra.mxu0 0.0
        %1426 = vmatprep.subr.mxu0 0.0
        %1427 = vmatpush1.msra.mxu0 0.0
        %1428 = vmatprep.subr.mxu0 0.0
        %1429 = vmatpush1.msra.mxu0 0.0
        %1430 = vmatprep.subr.mxu0 0.0
        %1431 = vmatpush1.msra.mxu0 0.0
        %1432 = vmatprep.subr.mxu0 0.0
        %1433 = vmatpush1.msra.mxu0 0.0
        %1434 = vmatprep.subr.mxu0 0.0
        %1435 = vmatpush1.msra.mxu0 0.0
        %1436 = vmatprep.subr.mxu0 0.0
        %1437 = vmatpush1.msra.mxu0 0.0
        %1438 = vmatprep.subr.mxu0 0.0
        %1439 = vmatpush1.msra.mxu0 0.0
        %1440 = vmatprep.subr.mxu0 0.0
        %1441 = vmatpush1.msra.mxu0 0.0
        %1442 = vmatprep.subr.mxu0 0.0
        %1443 = vmatpush1.msra.mxu0 0.0
        %1444 = vmatprep.subr.mxu0 0.0
        %1445 = vmatpush1.msra.mxu0 0.0
        %1446 = vmatprep.subr.mxu0 0.0
        %1447 = vmatpush1.msra.mxu0 0.0
        %1448 = vmatprep.subr.mxu0 0.0
        %1449 = vmatpush1.msra.mxu0 0.0
        %1450 = vmatprep.subr.mxu0 0.0
        %1451 = vmatpush1.msra.mxu0 0.0
        %1452 = vmatprep.subr.mxu0 0.0
        %1453 = vmatpush1.msra.mxu0 0.0
        %1454 = vmatprep.subr.mxu0 0.0
        %1455 = vmatpush1.msra.mxu0 0.0
        %1456 = vmatprep.subr.mxu0 0.0
        %1457 = vmatpush1.msra.mxu0 0.0
        %1458 = vmatprep.subr.mxu0 0.0
        %1459 = vmatpush1.msra.mxu0 0.0
        %1460 = vmatprep.mubr.f32.mxu0 0.0
        %1461 = vmatmul.mubr.f32.gmra.mrb[0].mxu0 %v1394
        %v1462 = vpop.f32.mrb[0].mxu0
        %v1463 = vadd.f32 %v1391, %v1462
        %v1464 = vpop.f32.mrb[0].mxu0
        %1465 = vdwg.mxu0
        %s1466 = scalar_lea.vmem %s1, 8
        %v1467 = vld [vmem:[%s1466] sm:$0xf]
        %v1469 = vsel %vm359, %v1463, 0
        %v1472 = vsel %vm363, %v1467, 0
        %1474 = vmatprep.subr.mxu0 0.0
        %1475 = vmatpush1.msra.mxu0 %v1472
        %1476 = vmatprep.subr.mxu0 0.0
        %1477 = vmatpush1.msra.mxu0 0.0
        %1478 = vmatprep.subr.mxu0 0.0
        %1479 = vmatpush1.msra.mxu0 0.0
        %1480 = vmatprep.subr.mxu0 0.0
        %1481 = vmatpush1.msra.mxu0 0.0
        %1482 = vmatprep.subr.mxu0 0.0
        %1483 = vmatpush1.msra.mxu0 0.0
        %1484 = vmatprep.subr.mxu0 0.0
        %1485 = vmatpush1.msra.mxu0 0.0
        %1486 = vmatprep.subr.mxu0 0.0
        %1487 = vmatpush1.msra.mxu0 0.0
        %1488 = vmatprep.subr.mxu0 0.0
        %1489 = vmatpush1.msra.mxu0 0.0
        %1490 = vmatprep.subr.mxu0 0.0
        %1491 = vmatpush1.msra.mxu0 0.0
        %1492 = vmatprep.subr.mxu0 0.0
        %1493 = vmatpush1.msra.mxu0 0.0
        %1494 = vmatprep.subr.mxu0 0.0
        %1495 = vmatpush1.msra.mxu0 0.0
        %1496 = vmatprep.subr.mxu0 0.0
        %1497 = vmatpush1.msra.mxu0 0.0
        %1498 = vmatprep.subr.mxu0 0.0
        %1499 = vmatpush1.msra.mxu0 0.0
        %1500 = vmatprep.subr.mxu0 0.0
        %1501 = vmatpush1.msra.mxu0 0.0
        %1502 = vmatprep.subr.mxu0 0.0
        %1503 = vmatpush1.msra.mxu0 0.0
        %1504 = vmatprep.subr.mxu0 0.0
        %1505 = vmatpush1.msra.mxu0 0.0
        %1506 = vmatprep.subr.mxu0 0.0
        %1507 = vmatpush1.msra.mxu0 0.0
        %1508 = vmatprep.subr.mxu0 0.0
        %1509 = vmatpush1.msra.mxu0 0.0
        %1510 = vmatprep.subr.mxu0 0.0
        %1511 = vmatpush1.msra.mxu0 0.0
        %1512 = vmatprep.subr.mxu0 0.0
        %1513 = vmatpush1.msra.mxu0 0.0
        %1514 = vmatprep.subr.mxu0 0.0
        %1515 = vmatpush1.msra.mxu0 0.0
        %1516 = vmatprep.subr.mxu0 0.0
        %1517 = vmatpush1.msra.mxu0 0.0
        %1518 = vmatprep.subr.mxu0 0.0
        %1519 = vmatpush1.msra.mxu0 0.0
        %1520 = vmatprep.subr.mxu0 0.0
        %1521 = vmatpush1.msra.mxu0 0.0
        %1522 = vmatprep.subr.mxu0 0.0
        %1523 = vmatpush1.msra.mxu0 0.0
        %1524 = vmatprep.subr.mxu0 0.0
        %1525 = vmatpush1.msra.mxu0 0.0
        %1526 = vmatprep.subr.mxu0 0.0
        %1527 = vmatpush1.msra.mxu0 0.0
        %1528 = vmatprep.subr.mxu0 0.0
        %1529 = vmatpush1.msra.mxu0 0.0
        %1530 = vmatprep.subr.mxu0 0.0
        %1531 = vmatpush1.msra.mxu0 0.0
        %1532 = vmatprep.subr.mxu0 0.0
        %1533 = vmatpush1.msra.mxu0 0.0
        %1534 = vmatprep.subr.mxu0 0.0
        %1535 = vmatpush1.msra.mxu0 0.0
        %1536 = vmatprep.subr.mxu0 0.0
        %1537 = vmatpush1.msra.mxu0 0.0
        %1538 = vmatprep.mubr.f32.mxu0 0.0
        %1539 = vmatmul.mubr.f32.gmra.mrb[0].mxu0 %v1469
        %v1540 = vpop.f32.mrb[0].mxu0
        %v1541 = vadd.f32 0.0, %v1540
        %v1542 = vpop.f32.mrb[0].mxu0
        %1543 = vdwg.mxu0
        %s1544 = scalar_lea.vmem %s2, 8
        %v1545 = vld [vmem:[%s1544] sm:$0xf]
        %v1547 = vsel %vm363, %v1545, 0
        %1549 = vmatprep.subr.mxu0 0.0
        %1550 = vmatpush1.msra.mxu0 %v1547
        %1551 = vmatprep.subr.mxu0 0.0
        %1552 = vmatpush1.msra.mxu0 0.0
        %1553 = vmatprep.subr.mxu0 0.0
        %1554 = vmatpush1.msra.mxu0 0.0
        %1555 = vmatprep.subr.mxu0 0.0
        %1556 = vmatpush1.msra.mxu0 0.0
        %1557 = vmatprep.subr.mxu0 0.0
        %1558 = vmatpush1.msra.mxu0 0.0
        %1559 = vmatprep.subr.mxu0 0.0
        %1560 = vmatpush1.msra.mxu0 0.0
        %1561 = vmatprep.subr.mxu0 0.0
        %1562 = vmatpush1.msra.mxu0 0.0
        %1563 = vmatprep.subr.mxu0 0.0
        %1564 = vmatpush1.msra.mxu0 0.0
        %1565 = vmatprep.subr.mxu0 0.0
        %1566 = vmatpush1.msra.mxu0 0.0
        %1567 = vmatprep.subr.mxu0 0.0
        %1568 = vmatpush1.msra.mxu0 0.0
        %1569 = vmatprep.subr.mxu0 0.0
        %1570 = vmatpush1.msra.mxu0 0.0
        %1571 = vmatprep.subr.mxu0 0.0
        %1572 = vmatpush1.msra.mxu0 0.0
        %1573 = vmatprep.subr.mxu0 0.0
        %1574 = vmatpush1.msra.mxu0 0.0
        %1575 = vmatprep.subr.mxu0 0.0
        %1576 = vmatpush1.msra.mxu0 0.0
        %1577 = vmatprep.subr.mxu0 0.0
        %1578 = vmatpush1.msra.mxu0 0.0
        %1579 = vmatprep.subr.mxu0 0.0
        %1580 = vmatpush1.msra.mxu0 0.0
        %1581 = vmatprep.subr.mxu0 0.0
        %1582 = vmatpush1.msra.mxu0 0.0
        %1583 = vmatprep.subr.mxu0 0.0
        %1584 = vmatpush1.msra.mxu0 0.0
        %1585 = vmatprep.subr.mxu0 0.0
        %1586 = vmatpush1.msra.mxu0 0.0
        %1587 = vmatprep.subr.mxu0 0.0
        %1588 = vmatpush1.msra.mxu0 0.0
        %1589 = vmatprep.subr.mxu0 0.0
        %1590 = vmatpush1.msra.mxu0 0.0
        %1591 = vmatprep.subr.mxu0 0.0
        %1592 = vmatpush1.msra.mxu0 0.0
        %1593 = vmatprep.subr.mxu0 0.0
        %1594 = vmatpush1.msra.mxu0 0.0
        %1595 = vmatprep.subr.mxu0 0.0
        %1596 = vmatpush1.msra.mxu0 0.0
        %1597 = vmatprep.subr.mxu0 0.0
        %1598 = vmatpush1.msra.mxu0 0.0
        %1599 = vmatprep.subr.mxu0 0.0
        %1600 = vmatpush1.msra.mxu0 0.0
        %1601 = vmatprep.subr.mxu0 0.0
        %1602 = vmatpush1.msra.mxu0 0.0
        %1603 = vmatprep.subr.mxu0 0.0
        %1604 = vmatpush1.msra.mxu0 0.0
        %1605 = vmatprep.subr.mxu0 0.0
        %1606 = vmatpush1.msra.mxu0 0.0
        %1607 = vmatprep.subr.mxu0 0.0
        %1608 = vmatpush1.msra.mxu0 0.0
        %1609 = vmatprep.subr.mxu0 0.0
        %1610 = vmatpush1.msra.mxu0 0.0
        %1611 = vmatprep.subr.mxu0 0.0
        %1612 = vmatpush1.msra.mxu0 0.0
        %1613 = vmatprep.mubr.f32.mxu0 0.0
        %1614 = vmatmul.mubr.f32.gmra.mrb[0].mxu0 %v1469
        %v1615 = vpop.f32.mrb[0].mxu0
        %v1616 = vadd.f32 0.0, %v1615
        %v1617 = vpop.f32.mrb[0].mxu0
        %1618 = vdwg.mxu0
        %s1619 = scalar_lea.vmem %s3, 8
        %v1620 = vld [vmem:[%s1619] sm:$0xf]
        %v1622 = vsel %vm363, %v1620, 0
        %1624 = vmatprep.subr.mxu0 0.0
        %1625 = vmatpush1.msra.mxu0 %v1622
        %1626 = vmatprep.subr.mxu0 0.0
        %1627 = vmatpush1.msra.mxu0 0.0
        %1628 = vmatprep.subr.mxu0 0.0
        %1629 = vmatpush1.msra.mxu0 0.0
        %1630 = vmatprep.subr.mxu0 0.0
        %1631 = vmatpush1.msra.mxu0 0.0
        %1632 = vmatprep.subr.mxu0 0.0
        %1633 = vmatpush1.msra.mxu0 0.0
        %1634 = vmatprep.subr.mxu0 0.0
        %1635 = vmatpush1.msra.mxu0 0.0
        %1636 = vmatprep.subr.mxu0 0.0
        %1637 = vmatpush1.msra.mxu0 0.0
        %1638 = vmatprep.subr.mxu0 0.0
        %1639 = vmatpush1.msra.mxu0 0.0
        %1640 = vmatprep.subr.mxu0 0.0
        %1641 = vmatpush1.msra.mxu0 0.0
        %1642 = vmatprep.subr.mxu0 0.0
        %1643 = vmatpush1.msra.mxu0 0.0
        %1644 = vmatprep.subr.mxu0 0.0
        %1645 = vmatpush1.msra.mxu0 0.0
        %1646 = vmatprep.subr.mxu0 0.0
        %1647 = vmatpush1.msra.mxu0 0.0
        %1648 = vmatprep.subr.mxu0 0.0
        %1649 = vmatpush1.msra.mxu0 0.0
        %1650 = vmatprep.subr.mxu0 0.0
        %1651 = vmatpush1.msra.mxu0 0.0
        %1652 = vmatprep.subr.mxu0 0.0
        %1653 = vmatpush1.msra.mxu0 0.0
        %1654 = vmatprep.subr.mxu0 0.0
        %1655 = vmatpush1.msra.mxu0 0.0
        %1656 = vmatprep.subr.mxu0 0.0
        %1657 = vmatpush1.msra.mxu0 0.0
        %1658 = vmatprep.subr.mxu0 0.0
        %1659 = vmatpush1.msra.mxu0 0.0
        %1660 = vmatprep.subr.mxu0 0.0
        %1661 = vmatpush1.msra.mxu0 0.0
        %1662 = vmatprep.subr.mxu0 0.0
        %1663 = vmatpush1.msra.mxu0 0.0
        %1664 = vmatprep.subr.mxu0 0.0
        %1665 = vmatpush1.msra.mxu0 0.0
        %1666 = vmatprep.subr.mxu0 0.0
        %1667 = vmatpush1.msra.mxu0 0.0
        %1668 = vmatprep.subr.mxu0 0.0
        %1669 = vmatpush1.msra.mxu0 0.0
        %1670 = vmatprep.subr.mxu0 0.0
        %1671 = vmatpush1.msra.mxu0 0.0
        %1672 = vmatprep.subr.mxu0 0.0
        %1673 = vmatpush1.msra.mxu0 0.0
        %1674 = vmatprep.subr.mxu0 0.0
        %1675 = vmatpush1.msra.mxu0 0.0
        %1676 = vmatprep.subr.mxu0 0.0
        %1677 = vmatpush1.msra.mxu0 0.0
        %1678 = vmatprep.subr.mxu0 0.0
        %1679 = vmatpush1.msra.mxu0 0.0
        %1680 = vmatprep.subr.mxu0 0.0
        %1681 = vmatpush1.msra.mxu0 0.0
        %1682 = vmatprep.subr.mxu0 0.0
        %1683 = vmatpush1.msra.mxu0 0.0
        %1684 = vmatprep.subr.mxu0 0.0
        %1685 = vmatpush1.msra.mxu0 0.0
        %1686 = vmatprep.subr.mxu0 0.0
        %1687 = vmatpush1.msra.mxu0 0.0
        %1688 = vmatprep.mubr.f32.mxu0 0.0
        %1689 = vmatmul.mubr.f32.gmra.mrb[0].mxu0 %v1469
        %v1690 = vpop.f32.mrb[0].mxu0
        %v1691 = vadd.f32 0.0, %v1690
        %v1692 = vpop.f32.mrb[0].mxu0
        %1693 = vdwg.mxu0
        %v1695 = vsel %vm585, %v1541, 0
        %v1698 = vsel %vm585, %v1616, 0
        %1700 = vmatprep.subr.mxu0 0.0
        %1701 = vmatpush1.xpose.msra.mxu0 %v1698
        %1702 = vmatprep.subr.mxu0 0.0
        %1703 = vmatpush1.xpose.msra.mxu0 0.0
        %1704 = vmatprep.subr.mxu0 0.0
        %1705 = vmatpush1.xpose.msra.mxu0 0.0
        %1706 = vmatprep.subr.mxu0 0.0
        %1707 = vmatpush1.xpose.msra.mxu0 0.0
        %1708 = vmatprep.subr.mxu0 0.0
        %1709 = vmatpush1.xpose.msra.mxu0 0.0
        %1710 = vmatprep.subr.mxu0 0.0
        %1711 = vmatpush1.xpose.msra.mxu0 0.0
        %1712 = vmatprep.subr.mxu0 0.0
        %1713 = vmatpush1.xpose.msra.mxu0 0.0
        %1714 = vmatprep.subr.mxu0 0.0
        %1715 = vmatpush1.xpose.msra.mxu0 0.0
        %1716 = vmatprep.subr.mxu0 0.0
        %1717 = vmatpush1.xpose.msra.mxu0 0.0
        %1718 = vmatprep.subr.mxu0 0.0
        %1719 = vmatpush1.xpose.msra.mxu0 0.0
        %1720 = vmatprep.subr.mxu0 0.0
        %1721 = vmatpush1.xpose.msra.mxu0 0.0
        %1722 = vmatprep.subr.mxu0 0.0
        %1723 = vmatpush1.xpose.msra.mxu0 0.0
        %1724 = vmatprep.subr.mxu0 0.0
        %1725 = vmatpush1.xpose.msra.mxu0 0.0
        %1726 = vmatprep.subr.mxu0 0.0
        %1727 = vmatpush1.xpose.msra.mxu0 0.0
        %1728 = vmatprep.subr.mxu0 0.0
        %1729 = vmatpush1.xpose.msra.mxu0 0.0
        %1730 = vmatprep.subr.mxu0 0.0
        %1731 = vmatpush1.xpose.msra.mxu0 0.0
        %1732 = vmatprep.subr.mxu0 0.0
        %1733 = vmatpush1.xpose.msra.mxu0 0.0
        %1734 = vmatprep.subr.mxu0 0.0
        %1735 = vmatpush1.xpose.msra.mxu0 0.0
        %1736 = vmatprep.subr.mxu0 0.0
        %1737 = vmatpush1.xpose.msra.mxu0 0.0
        %1738 = vmatprep.subr.mxu0 0.0
        %1739 = vmatpush1.xpose.msra.mxu0 0.0
        %1740 = vmatprep.subr.mxu0 0.0
        %1741 = vmatpush1.xpose.msra.mxu0 0.0
        %1742 = vmatprep.subr.mxu0 0.0
        %1743 = vmatpush1.xpose.msra.mxu0 0.0
        %1744 = vmatprep.subr.mxu0 0.0
        %1745 = vmatpush1.xpose.msra.mxu0 0.0
        %1746 = vmatprep.subr.mxu0 0.0
        %1747 = vmatpush1.xpose.msra.mxu0 0.0
        %1748 = vmatprep.subr.mxu0 0.0
        %1749 = vmatpush1.xpose.msra.mxu0 0.0
        %1750 = vmatprep.subr.mxu0 0.0
        %1751 = vmatpush1.xpose.msra.mxu0 0.0
        %1752 = vmatprep.subr.mxu0 0.0
        %1753 = vmatpush1.xpose.msra.mxu0 0.0
        %1754 = vmatprep.subr.mxu0 0.0
        %1755 = vmatpush1.xpose.msra.mxu0 0.0
        %1756 = vmatprep.subr.mxu0 0.0
        %1757 = vmatpush1.xpose.msra.mxu0 0.0
        %1758 = vmatprep.subr.mxu0 0.0
        %1759 = vmatpush1.xpose.msra.mxu0 0.0
        %1760 = vmatprep.subr.mxu0 0.0
        %1761 = vmatpush1.xpose.msra.mxu0 0.0
        %1762 = vmatprep.subr.mxu0 0.0
        %1763 = vmatpush1.xpose.msra.mxu0 0.0
        %1764 = vmatprep.mubr.f32.mxu0 0.0
        %1765 = vmatmul.mubr.f32.gmra.mrb[0].mxu0 %v1695
        %v1766 = vpop.f32.mrb[0].mxu0
        %v1767 = vadd.f32 0.0, %v1766
        %v1768 = vpop.f32.mrb[0].mxu0
        %1769 = vdwg.mxu0
        %v1770 = vsel %vm357, %v1767, -1e+30
        %v1771 = vsel %vm663, %v1770, -inf
        %1772 = vmax.xlane.f32.xlu0 %v1771
        %v1773 = vpop.xlane.xlu0 %1772
        %v1774 = vsub.f32 %v1770, %v1773
        %v1775 = vmul.f32 %v1774, 1.442695
        %v1776 = vpow.pop %v1775
        %v1777 = vsel %vm663, %v1776, 0.0
        %1778 = vadd.xlane.f32.xlu0 %v1777
        %v1779 = vpop.xlane.xlu0 %1778
        %v1780 = vrcp.pop %v1779
        %v1781 = vmul.f32 %v1776, %v1780
        %v1783 = vsel %vm663, %v1781, 0
        %1785 = vmatprep.subr.mxu0 0.0
        %1786 = vmatpush1.msra.mxu0 %v1691
        %1787 = vmatprep.subr.mxu0 0.0
        %1788 = vmatpush1.msra.mxu0 0.0
        %1789 = vmatprep.subr.mxu0 0.0
        %1790 = vmatpush1.msra.mxu0 0.0
        %1791 = vmatprep.subr.mxu0 0.0
        %1792 = vmatpush1.msra.mxu0 0.0
        %1793 = vmatprep.subr.mxu0 0.0
        %1794 = vmatpush1.msra.mxu0 0.0
        %1795 = vmatprep.subr.mxu0 0.0
        %1796 = vmatpush1.msra.mxu0 0.0
        %1797 = vmatprep.subr.mxu0 0.0
        %1798 = vmatpush1.msra.mxu0 0.0
        %1799 = vmatprep.subr.mxu0 0.0
        %1800 = vmatpush1.msra.mxu0 0.0
        %1801 = vmatprep.subr.mxu0 0.0
        %1802 = vmatpush1.msra.mxu0 0.0
        %1803 = vmatprep.subr.mxu0 0.0
        %1804 = vmatpush1.msra.mxu0 0.0
        %1805 = vmatprep.subr.mxu0 0.0
        %1806 = vmatpush1.msra.mxu0 0.0
        %1807 = vmatprep.subr.mxu0 0.0
        %1808 = vmatpush1.msra.mxu0 0.0
        %1809 = vmatprep.subr.mxu0 0.0
        %1810 = vmatpush1.msra.mxu0 0.0
        %1811 = vmatprep.subr.mxu0 0.0
        %1812 = vmatpush1.msra.mxu0 0.0
        %1813 = vmatprep.subr.mxu0 0.0
        %1814 = vmatpush1.msra.mxu0 0.0
        %1815 = vmatprep.subr.mxu0 0.0
        %1816 = vmatpush1.msra.mxu0 0.0
        %1817 = vmatprep.subr.mxu0 0.0
        %1818 = vmatpush1.msra.mxu0 0.0
        %1819 = vmatprep.subr.mxu0 0.0
        %1820 = vmatpush1.msra.mxu0 0.0
        %1821 = vmatprep.subr.mxu0 0.0
        %1822 = vmatpush1.msra.mxu0 0.0
        %1823 = vmatprep.subr.mxu0 0.0
        %1824 = vmatpush1.msra.mxu0 0.0
        %1825 = vmatprep.subr.mxu0 0.0
        %1826 = vmatpush1.msra.mxu0 0.0
        %1827 = vmatprep.subr.mxu0 0.0
        %1828 = vmatpush1.msra.mxu0 0.0
        %1829 = vmatprep.subr.mxu0 0.0
        %1830 = vmatpush1.msra.mxu0 0.0
        %1831 = vmatprep.subr.mxu0 0.0
        %1832 = vmatpush1.msra.mxu0 0.0
        %1833 = vmatprep.subr.mxu0 0.0
        %1834 = vmatpush1.msra.mxu0 0.0
        %1835 = vmatprep.subr.mxu0 0.0
        %1836 = vmatpush1.msra.mxu0 0.0
        %1837 = vmatprep.subr.mxu0 0.0
        %1838 = vmatpush1.msra.mxu0 0.0
        %1839 = vmatprep.subr.mxu0 0.0
        %1840 = vmatpush1.msra.mxu0 0.0
        %1841 = vmatprep.subr.mxu0 0.0
        %1842 = vmatpush1.msra.mxu0 0.0
        %1843 = vmatprep.subr.mxu0 0.0
        %1844 = vmatpush1.msra.mxu0 0.0
        %1845 = vmatprep.subr.mxu0 0.0
        %1846 = vmatpush1.msra.mxu0 0.0
        %1847 = vmatprep.subr.mxu0 0.0
        %1848 = vmatpush1.msra.mxu0 0.0
        %1849 = vmatprep.mubr.f32.mxu0 0.0
        %1850 = vmatmul.mubr.f32.gmra.mrb[0].mxu0 %v1783
        %v1851 = vpop.f32.mrb[0].mxu0
        %v1852 = vadd.f32 0.0, %v1851
        %v1853 = vpop.f32.mrb[0].mxu0
        %1854 = vdwg.mxu0
        %s1855 = scalar_lea.vmem %s4, 4
        %v1856 = vld [vmem:[%s1855] sm:$0x3]
        %s1857 = scalar_lea.vmem %s1, 12
        %v1858 = vld [vmem:[%s1857] sm:$0xf]
        %v1860 = vsel %vm363, %v1858, 0
        %1862 = vmatprep.subr.mxu0 0.0
        %1863 = vmatpush1.msra.mxu0 %v1860
        %1864 = vmatprep.subr.mxu0 0.0
        %1865 = vmatpush1.msra.mxu0 0.0
        %1866 = vmatprep.subr.mxu0 0.0
        %1867 = vmatpush1.msra.mxu0 0.0
        %1868 = vmatprep.subr.mxu0 0.0
        %1869 = vmatpush1.msra.mxu0 0.0
        %1870 = vmatprep.subr.mxu0 0.0
        %1871 = vmatpush1.msra.mxu0 0.0
        %1872 = vmatprep.subr.mxu0 0.0
        %1873 = vmatpush1.msra.mxu0 0.0
        %1874 = vmatprep.subr.mxu0 0.0
        %1875 = vmatpush1.msra.mxu0 0.0
        %1876 = vmatprep.subr.mxu0 0.0
        %1877 = vmatpush1.msra.mxu0 0.0
        %1878 = vmatprep.subr.mxu0 0.0
        %1879 = vmatpush1.msra.mxu0 0.0
        %1880 = vmatprep.subr.mxu0 0.0
        %1881 = vmatpush1.msra.mxu0 0.0
        %1882 = vmatprep.subr.mxu0 0.0
        %1883 = vmatpush1.msra.mxu0 0.0
        %1884 = vmatprep.subr.mxu0 0.0
        %1885 = vmatpush1.msra.mxu0 0.0
        %1886 = vmatprep.subr.mxu0 0.0
        %1887 = vmatpush1.msra.mxu0 0.0
        %1888 = vmatprep.subr.mxu0 0.0
        %1889 = vmatpush1.msra.mxu0 0.0
        %1890 = vmatprep.subr.mxu0 0.0
        %1891 = vmatpush1.msra.mxu0 0.0
        %1892 = vmatprep.subr.mxu0 0.0
        %1893 = vmatpush1.msra.mxu0 0.0
        %1894 = vmatprep.subr.mxu0 0.0
        %1895 = vmatpush1.msra.mxu0 0.0
        %1896 = vmatprep.subr.mxu0 0.0
        %1897 = vmatpush1.msra.mxu0 0.0
        %1898 = vmatprep.subr.mxu0 0.0
        %1899 = vmatpush1.msra.mxu0 0.0
        %1900 = vmatprep.subr.mxu0 0.0
        %1901 = vmatpush1.msra.mxu0 0.0
        %1902 = vmatprep.subr.mxu0 0.0
        %1903 = vmatpush1.msra.mxu0 0.0
        %1904 = vmatprep.subr.mxu0 0.0
        %1905 = vmatpush1.msra.mxu0 0.0
        %1906 = vmatprep.subr.mxu0 0.0
        %1907 = vmatpush1.msra.mxu0 0.0
        %1908 = vmatprep.subr.mxu0 0.0
        %1909 = vmatpush1.msra.mxu0 0.0
        %1910 = vmatprep.subr.mxu0 0.0
        %1911 = vmatpush1.msra.mxu0 0.0
        %1912 = vmatprep.subr.mxu0 0.0
        %1913 = vmatpush1.msra.mxu0 0.0
        %1914 = vmatprep.subr.mxu0 0.0
        %1915 = vmatpush1.msra.mxu0 0.0
        %1916 = vmatprep.subr.mxu0 0.0
        %1917 = vmatpush1.msra.mxu0 0.0
        %1918 = vmatprep.subr.mxu0 0.0
        %1919 = vmatpush1.msra.mxu0 0.0
        %1920 = vmatprep.subr.mxu0 0.0
        %1921 = vmatpush1.msra.mxu0 0.0
        %1922 = vmatprep.subr.mxu0 0.0
        %1923 = vmatpush1.msra.mxu0 0.0
        %1924 = vmatprep.subr.mxu0 0.0
        %1925 = vmatpush1.msra.mxu0 0.0
        %1926 = vmatprep.mubr.f32.mxu0 0.0
        %1927 = vmatmul.mubr.f32.gmra.mrb[0].mxu0 %v1469
        %v1928 = vpop.f32.mrb[0].mxu0
        %v1929 = vadd.f32 0.0, %v1928
        %v1930 = vpop.f32.mrb[0].mxu0
        %1931 = vdwg.mxu0
        %s1932 = scalar_lea.vmem %s2, 12
        %v1933 = vld [vmem:[%s1932] sm:$0xf]
        %v1935 = vsel %vm363, %v1933, 0
        %1937 = vmatprep.subr.mxu0 0.0
        %1938 = vmatpush1.msra.mxu0 %v1935
        %1939 = vmatprep.subr.mxu0 0.0
        %1940 = vmatpush1.msra.mxu0 0.0
        %1941 = vmatprep.subr.mxu0 0.0
        %1942 = vmatpush1.msra.mxu0 0.0
        %1943 = vmatprep.subr.mxu0 0.0
        %1944 = vmatpush1.msra.mxu0 0.0
        %1945 = vmatprep.subr.mxu0 0.0
        %1946 = vmatpush1.msra.mxu0 0.0
        %1947 = vmatprep.subr.mxu0 0.0
        %1948 = vmatpush1.msra.mxu0 0.0
        %1949 = vmatprep.subr.mxu0 0.0
        %1950 = vmatpush1.msra.mxu0 0.0
        %1951 = vmatprep.subr.mxu0 0.0
        %1952 = vmatpush1.msra.mxu0 0.0
        %1953 = vmatprep.subr.mxu0 0.0
        %1954 = vmatpush1.msra.mxu0 0.0
        %1955 = vmatprep.subr.mxu0 0.0
        %1956 = vmatpush1.msra.mxu0 0.0
        %1957 = vmatprep.subr.mxu0 0.0
        %1958 = vmatpush1.msra.mxu0 0.0
        %1959 = vmatprep.subr.mxu0 0.0
        %1960 = vmatpush1.msra.mxu0 0.0
        %1961 = vmatprep.subr.mxu0 0.0
        %1962 = vmatpush1.msra.mxu0 0.0
        %1963 = vmatprep.subr.mxu0 0.0
        %1964 = vmatpush1.msra.mxu0 0.0
        %1965 = vmatprep.subr.mxu0 0.0
        %1966 = vmatpush1.msra.mxu0 0.0
        %1967 = vmatprep.subr.mxu0 0.0
        %1968 = vmatpush1.msra.mxu0 0.0
        %1969 = vmatprep.subr.mxu0 0.0
        %1970 = vmatpush1.msra.mxu0 0.0
        %1971 = vmatprep.subr.mxu0 0.0
        %1972 = vmatpush1.msra.mxu0 0.0
        %1973 = vmatprep.subr.mxu0 0.0
        %1974 = vmatpush1.msra.mxu0 0.0
        %1975 = vmatprep.subr.mxu0 0.0
        %1976 = vmatpush1.msra.mxu0 0.0
        %1977 = vmatprep.subr.mxu0 0.0
        %1978 = vmatpush1.msra.mxu0 0.0
        %1979 = vmatprep.subr.mxu0 0.0
        %1980 = vmatpush1.msra.mxu0 0.0
        %1981 = vmatprep.subr.mxu0 0.0
        %1982 = vmatpush1.msra.mxu0 0.0
        %1983 = vmatprep.subr.mxu0 0.0
        %1984 = vmatpush1.msra.mxu0 0.0
        %1985 = vmatprep.subr.mxu0 0.0
        %1986 = vmatpush1.msra.mxu0 0.0
        %1987 = vmatprep.subr.mxu0 0.0
        %1988 = vmatpush1.msra.mxu0 0.0
        %1989 = vmatprep.subr.mxu0 0.0
        %1990 = vmatpush1.msra.mxu0 0.0
        %1991 = vmatprep.subr.mxu0 0.0
        %1992 = vmatpush1.msra.mxu0 0.0
        %1993 = vmatprep.subr.mxu0 0.0
        %1994 = vmatpush1.msra.mxu0 0.0
        %1995 = vmatprep.subr.mxu0 0.0
        %1996 = vmatpush1.msra.mxu0 0.0
        %1997 = vmatprep.subr.mxu0 0.0
        %1998 = vmatpush1.msra.mxu0 0.0
        %1999 = vmatprep.subr.mxu0 0.0
        %2000 = vmatpush1.msra.mxu0 0.0
        %2001 = vmatprep.mubr.f32.mxu0 0.0
        %2002 = vmatmul.mubr.f32.gmra.mrb[0].mxu0 %v1469
        %v2003 = vpop.f32.mrb[0].mxu0
        %v2004 = vadd.f32 0.0, %v2003
        %v2005 = vpop.f32.mrb[0].mxu0
        %2006 = vdwg.mxu0
        %s2007 = scalar_lea.vmem %s3, 12
        %v2008 = vld [vmem:[%s2007] sm:$0xf]
        %v2010 = vsel %vm363, %v2008, 0
        %2012 = vmatprep.subr.mxu0 0.0
        %2013 = vmatpush1.msra.mxu0 %v2010
        %2014 = vmatprep.subr.mxu0 0.0
        %2015 = vmatpush1.msra.mxu0 0.0
        %2016 = vmatprep.subr.mxu0 0.0
        %2017 = vmatpush1.msra.mxu0 0.0
        %2018 = vmatprep.subr.mxu0 0.0
        %2019 = vmatpush1.msra.mxu0 0.0
        %2020 = vmatprep.subr.mxu0 0.0
        %2021 = vmatpush1.msra.mxu0 0.0
        %2022 = vmatprep.subr.mxu0 0.0
        %2023 = vmatpush1.msra.mxu0 0.0
        %2024 = vmatprep.subr.mxu0 0.0
        %2025 = vmatpush1.msra.mxu0 0.0
        %2026 = vmatprep.subr.mxu0 0.0
        %2027 = vmatpush1.msra.mxu0 0.0
        %2028 = vmatprep.subr.mxu0 0.0
        %2029 = vmatpush1.msra.mxu0 0.0
        %2030 = vmatprep.subr.mxu0 0.0
        %2031 = vmatpush1.msra.mxu0 0.0
        %2032 = vmatprep.subr.mxu0 0.0
        %2033 = vmatpush1.msra.mxu0 0.0
        %2034 = vmatprep.subr.mxu0 0.0
        %2035 = vmatpush1.msra.mxu0 0.0
        %2036 = vmatprep.subr.mxu0 0.0
        %2037 = vmatpush1.msra.mxu0 0.0
        %2038 = vmatprep.subr.mxu0 0.0
        %2039 = vmatpush1.msra.mxu0 0.0
        %2040 = vmatprep.subr.mxu0 0.0
        %2041 = vmatpush1.msra.mxu0 0.0
        %2042 = vmatprep.subr.mxu0 0.0
        %2043 = vmatpush1.msra.mxu0 0.0
        %2044 = vmatprep.subr.mxu0 0.0
        %2045 = vmatpush1.msra.mxu0 0.0
        %2046 = vmatprep.subr.mxu0 0.0
        %2047 = vmatpush1.msra.mxu0 0.0
        %2048 = vmatprep.subr.mxu0 0.0
        %2049 = vmatpush1.msra.mxu0 0.0
        %2050 = vmatprep.subr.mxu0 0.0
        %2051 = vmatpush1.msra.mxu0 0.0
        %2052 = vmatprep.subr.mxu0 0.0
        %2053 = vmatpush1.msra.mxu0 0.0
        %2054 = vmatprep.subr.mxu0 0.0
        %2055 = vmatpush1.msra.mxu0 0.0
        %2056 = vmatprep.subr.mxu0 0.0
        %2057 = vmatpush1.msra.mxu0 0.0
        %2058 = vmatprep.subr.mxu0 0.0
        %2059 = vmatpush1.msra.mxu0 0.0
        %2060 = vmatprep.subr.mxu0 0.0
        %2061 = vmatpush1.msra.mxu0 0.0
        %2062 = vmatprep.subr.mxu0 0.0
        %2063 = vmatpush1.msra.mxu0 0.0
        %2064 = vmatprep.subr.mxu0 0.0
        %2065 = vmatpush1.msra.mxu0 0.0
        %2066 = vmatprep.subr.mxu0 0.0
        %2067 = vmatpush1.msra.mxu0 0.0
        %2068 = vmatprep.subr.mxu0 0.0
        %2069 = vmatpush1.msra.mxu0 0.0
        %2070 = vmatprep.subr.mxu0 0.0
        %2071 = vmatpush1.msra.mxu0 0.0
        %2072 = vmatprep.subr.mxu0 0.0
        %2073 = vmatpush1.msra.mxu0 0.0
        %2074 = vmatprep.subr.mxu0 0.0
        %2075 = vmatpush1.msra.mxu0 0.0
        %2076 = vmatprep.mubr.f32.mxu0 0.0
        %2077 = vmatmul.mubr.f32.gmra.mrb[0].mxu0 %v1469
        %v2078 = vpop.f32.mrb[0].mxu0
        %v2079 = vadd.f32 0.0, %v2078
        %v2080 = vpop.f32.mrb[0].mxu0
        %2081 = vdwg.mxu0
        %v2083 = vsel %vm585, %v1929, 0
        %v2086 = vsel %vm585, %v2004, 0
        %2088 = vmatprep.subr.mxu0 0.0
        %2089 = vmatpush1.xpose.msra.mxu0 %v2086
        %2090 = vmatprep.subr.mxu0 0.0
        %2091 = vmatpush1.xpose.msra.mxu0 0.0
        %2092 = vmatprep.subr.mxu0 0.0
        %2093 = vmatpush1.xpose.msra.mxu0 0.0
        %2094 = vmatprep.subr.mxu0 0.0
        %2095 = vmatpush1.xpose.msra.mxu0 0.0
        %2096 = vmatprep.subr.mxu0 0.0
        %2097 = vmatpush1.xpose.msra.mxu0 0.0
        %2098 = vmatprep.subr.mxu0 0.0
        %2099 = vmatpush1.xpose.msra.mxu0 0.0
        %2100 = vmatprep.subr.mxu0 0.0
        %2101 = vmatpush1.xpose.msra.mxu0 0.0
        %2102 = vmatprep.subr.mxu0 0.0
        %2103 = vmatpush1.xpose.msra.mxu0 0.0
        %2104 = vmatprep.subr.mxu0 0.0
        %2105 = vmatpush1.xpose.msra.mxu0 0.0
        %2106 = vmatprep.subr.mxu0 0.0
        %2107 = vmatpush1.xpose.msra.mxu0 0.0
        %2108 = vmatprep.subr.mxu0 0.0
        %2109 = vmatpush1.xpose.msra.mxu0 0.0
        %2110 = vmatprep.subr.mxu0 0.0
        %2111 = vmatpush1.xpose.msra.mxu0 0.0
        %2112 = vmatprep.subr.mxu0 0.0
        %2113 = vmatpush1.xpose.msra.mxu0 0.0
        %2114 = vmatprep.subr.mxu0 0.0
        %2115 = vmatpush1.xpose.msra.mxu0 0.0
        %2116 = vmatprep.subr.mxu0 0.0
        %2117 = vmatpush1.xpose.msra.mxu0 0.0
        %2118 = vmatprep.subr.mxu0 0.0
        %2119 = vmatpush1.xpose.msra.mxu0 0.0
        %2120 = vmatprep.subr.mxu0 0.0
        %2121 = vmatpush1.xpose.msra.mxu0 0.0
        %2122 = vmatprep.subr.mxu0 0.0
        %2123 = vmatpush1.xpose.msra.mxu0 0.0
        %2124 = vmatprep.subr.mxu0 0.0
        %2125 = vmatpush1.xpose.msra.mxu0 0.0
        %2126 = vmatprep.subr.mxu0 0.0
        %2127 = vmatpush1.xpose.msra.mxu0 0.0
        %2128 = vmatprep.subr.mxu0 0.0
        %2129 = vmatpush1.xpose.msra.mxu0 0.0
        %2130 = vmatprep.subr.mxu0 0.0
        %2131 = vmatpush1.xpose.msra.mxu0 0.0
        %2132 = vmatprep.subr.mxu0 0.0
        %2133 = vmatpush1.xpose.msra.mxu0 0.0
        %2134 = vmatprep.subr.mxu0 0.0
        %2135 = vmatpush1.xpose.msra.mxu0 0.0
        %2136 = vmatprep.subr.mxu0 0.0
        %2137 = vmatpush1.xpose.msra.mxu0 0.0
        %2138 = vmatprep.subr.mxu0 0.0
        %2139 = vmatpush1.xpose.msra.mxu0 0.0
        %2140 = vmatprep.subr.mxu0 0.0
        %2141 = vmatpush1.xpose.msra.mxu0 0.0
        %2142 = vmatprep.subr.mxu0 0.0
        %2143 = vmatpush1.xpose.msra.mxu0 0.0
        %2144 = vmatprep.subr.mxu0 0.0
        %2145 = vmatpush1.xpose.msra.mxu0 0.0
        %2146 = vmatprep.subr.mxu0 0.0
        %2147 = vmatpush1.xpose.msra.mxu0 0.0
        %2148 = vmatprep.subr.mxu0 0.0
        %2149 = vmatpush1.xpose.msra.mxu0 0.0
        %2150 = vmatprep.subr.mxu0 0.0
        %2151 = vmatpush1.xpose.msra.mxu0 0.0
        %2152 = vmatprep.mubr.f32.mxu0 0.0
        %2153 = vmatmul.mubr.f32.gmra.mrb[0].mxu0 %v2083
        %v2154 = vpop.f32.mrb[0].mxu0
        %v2155 = vadd.f32 0.0, %v2154
        %v2156 = vpop.f32.mrb[0].mxu0
        %2157 = vdwg.mxu0
        %v2158 = vsel %vm357, %v2155, -1e+30
        %v2159 = vsel %vm663, %v2158, -inf
        %2160 = vmax.xlane.f32.xlu0 %v2159
        %v2161 = vpop.xlane.xlu0 %2160
        %v2162 = vsub.f32 %v2158, %v2161
        %v2163 = vmul.f32 %v2162, 1.442695
        %v2164 = vpow.pop %v2163
        %v2165 = vsel %vm663, %v2164, 0.0
        %2166 = vadd.xlane.f32.xlu0 %v2165
        %v2167 = vpop.xlane.xlu0 %2166
        %v2168 = vrcp.pop %v2167
        %v2169 = vmul.f32 %v2164, %v2168
        %v2171 = vsel %vm663, %v2169, 0
        %2173 = vmatprep.subr.mxu0 0.0
        %2174 = vmatpush1.msra.mxu0 %v2079
        %2175 = vmatprep.subr.mxu0 0.0
        %2176 = vmatpush1.msra.mxu0 0.0
        %2177 = vmatprep.subr.mxu0 0.0
        %2178 = vmatpush1.msra.mxu0 0.0
        %2179 = vmatprep.subr.mxu0 0.0
        %2180 = vmatpush1.msra.mxu0 0.0
        %2181 = vmatprep.subr.mxu0 0.0
        %2182 = vmatpush1.msra.mxu0 0.0
        %2183 = vmatprep.subr.mxu0 0.0
        %2184 = vmatpush1.msra.mxu0 0.0
        %2185 = vmatprep.subr.mxu0 0.0
        %2186 = vmatpush1.msra.mxu0 0.0
        %2187 = vmatprep.subr.mxu0 0.0
        %2188 = vmatpush1.msra.mxu0 0.0
        %2189 = vmatprep.subr.mxu0 0.0
        %2190 = vmatpush1.msra.mxu0 0.0
        %2191 = vmatprep.subr.mxu0 0.0
        %2192 = vmatpush1.msra.mxu0 0.0
        %2193 = vmatprep.subr.mxu0 0.0
        %2194 = vmatpush1.msra.mxu0 0.0
        %2195 = vmatprep.subr.mxu0 0.0
        %2196 = vmatpush1.msra.mxu0 0.0
        %2197 = vmatprep.subr.mxu0 0.0
        %2198 = vmatpush1.msra.mxu0 0.0
        %2199 = vmatprep.subr.mxu0 0.0
        %2200 = vmatpush1.msra.mxu0 0.0
        %2201 = vmatprep.subr.mxu0 0.0
        %2202 = vmatpush1.msra.mxu0 0.0
        %2203 = vmatprep.subr.mxu0 0.0
        %2204 = vmatpush1.msra.mxu0 0.0
        %2205 = vmatprep.subr.mxu0 0.0
        %2206 = vmatpush1.msra.mxu0 0.0
        %2207 = vmatprep.subr.mxu0 0.0
        %2208 = vmatpush1.msra.mxu0 0.0
        %2209 = vmatprep.subr.mxu0 0.0
        %2210 = vmatpush1.msra.mxu0 0.0
        %2211 = vmatprep.subr.mxu0 0.0
        %2212 = vmatpush1.msra.mxu0 0.0
        %2213 = vmatprep.subr.mxu0 0.0
        %2214 = vmatpush1.msra.mxu0 0.0
        %2215 = vmatprep.subr.mxu0 0.0
        %2216 = vmatpush1.msra.mxu0 0.0
        %2217 = vmatprep.subr.mxu0 0.0
        %2218 = vmatpush1.msra.mxu0 0.0
        %2219 = vmatprep.subr.mxu0 0.0
        %2220 = vmatpush1.msra.mxu0 0.0
        %2221 = vmatprep.subr.mxu0 0.0
        %2222 = vmatpush1.msra.mxu0 0.0
        %2223 = vmatprep.subr.mxu0 0.0
        %2224 = vmatpush1.msra.mxu0 0.0
        %2225 = vmatprep.subr.mxu0 0.0
        %2226 = vmatpush1.msra.mxu0 0.0
        %2227 = vmatprep.subr.mxu0 0.0
        %2228 = vmatpush1.msra.mxu0 0.0
        %2229 = vmatprep.subr.mxu0 0.0
        %2230 = vmatpush1.msra.mxu0 0.0
        %2231 = vmatprep.subr.mxu0 0.0
        %2232 = vmatpush1.msra.mxu0 0.0
        %2233 = vmatprep.subr.mxu0 0.0
        %2234 = vmatpush1.msra.mxu0 0.0
        %2235 = vmatprep.subr.mxu0 0.0
        %2236 = vmatpush1.msra.mxu0 0.0
        %2237 = vmatprep.mubr.f32.mxu0 0.0
        %2238 = vmatmul.mubr.f32.gmra.mrb[0].mxu0 %v2171
        %v2239 = vpop.f32.mrb[0].mxu0
        %v2240 = vadd.f32 0.0, %v2239
        %v2241 = vpop.f32.mrb[0].mxu0
        %2242 = vdwg.mxu0
        %s2243 = scalar_lea.vmem %s4, 6
        %v2244 = vld [vmem:[%s2243] sm:$0x3]
        %v2246 = vsel %vm585, %v2240, 0
        %v2249 = vsel %vm1140, %v2244, 0
        %2251 = vmatprep.subr.mxu0 0.0
        %2252 = vmatpush1.msra.mxu0 %v2249
        %2253 = vmatprep.subr.mxu0 0.0
        %2254 = vmatpush1.msra.mxu0 0.0
        %2255 = vmatprep.subr.mxu0 0.0
        %2256 = vmatpush1.msra.mxu0 0.0
        %2257 = vmatprep.subr.mxu0 0.0
        %2258 = vmatpush1.msra.mxu0 0.0
        %2259 = vmatprep.subr.mxu0 0.0
        %2260 = vmatpush1.msra.mxu0 0.0
        %2261 = vmatprep.subr.mxu0 0.0
        %2262 = vmatpush1.msra.mxu0 0.0
        %2263 = vmatprep.subr.mxu0 0.0
        %2264 = vmatpush1.msra.mxu0 0.0
        %2265 = vmatprep.subr.mxu0 0.0
        %2266 = vmatpush1.msra.mxu0 0.0
        %2267 = vmatprep.subr.mxu0 0.0
        %2268 = vmatpush1.msra.mxu0 0.0
        %2269 = vmatprep.subr.mxu0 0.0
        %2270 = vmatpush1.msra.mxu0 0.0
        %2271 = vmatprep.subr.mxu0 0.0
        %2272 = vmatpush1.msra.mxu0 0.0
        %2273 = vmatprep.subr.mxu0 0.0
        %2274 = vmatpush1.msra.mxu0 0.0
        %2275 = vmatprep.subr.mxu0 0.0
        %2276 = vmatpush1.msra.mxu0 0.0
        %2277 = vmatprep.subr.mxu0 0.0
        %2278 = vmatpush1.msra.mxu0 0.0
        %2279 = vmatprep.subr.mxu0 0.0
        %2280 = vmatpush1.msra.mxu0 0.0
        %2281 = vmatprep.subr.mxu0 0.0
        %2282 = vmatpush1.msra.mxu0 0.0
        %2283 = vmatprep.subr.mxu0 0.0
        %2284 = vmatpush1.msra.mxu0 0.0
        %2285 = vmatprep.subr.mxu0 0.0
        %2286 = vmatpush1.msra.mxu0 0.0
        %2287 = vmatprep.subr.mxu0 0.0
        %2288 = vmatpush1.msra.mxu0 0.0
        %2289 = vmatprep.subr.mxu0 0.0
        %2290 = vmatpush1.msra.mxu0 0.0
        %2291 = vmatprep.subr.mxu0 0.0
        %2292 = vmatpush1.msra.mxu0 0.0
        %2293 = vmatprep.subr.mxu0 0.0
        %2294 = vmatpush1.msra.mxu0 0.0
        %2295 = vmatprep.subr.mxu0 0.0
        %2296 = vmatpush1.msra.mxu0 0.0
        %2297 = vmatprep.subr.mxu0 0.0
        %2298 = vmatpush1.msra.mxu0 0.0
        %2299 = vmatprep.subr.mxu0 0.0
        %2300 = vmatpush1.msra.mxu0 0.0
        %2301 = vmatprep.subr.mxu0 0.0
        %2302 = vmatpush1.msra.mxu0 0.0
        %2303 = vmatprep.subr.mxu0 0.0
        %2304 = vmatpush1.msra.mxu0 0.0
        %2305 = vmatprep.subr.mxu0 0.0
        %2306 = vmatpush1.msra.mxu0 0.0
        %2307 = vmatprep.subr.mxu0 0.0
        %2308 = vmatpush1.msra.mxu0 0.0
        %2309 = vmatprep.subr.mxu0 0.0
        %2310 = vmatpush1.msra.mxu0 0.0
        %2311 = vmatprep.subr.mxu0 0.0
        %2312 = vmatpush1.msra.mxu0 0.0
        %2313 = vmatprep.subr.mxu0 0.0
        %2314 = vmatpush1.msra.mxu0 0.0
        %2315 = vmatprep.mubr.f32.mxu0 0.0
        %2316 = vmatmul.mubr.f32.gmra.mrb[0].mxu0 %v2246
        %v2317 = vpop.f32.mrb[0].mxu0
        %v2318 = vadd.f32 0.0, %v2317
        %v2319 = vpop.f32.mrb[0].mxu0
        %2320 = vdwg.mxu0
        %v2322 = vsel %vm585, %v1852, 0
        %v2325 = vsel %vm1140, %v1856, 0
        %2327 = vmatprep.subr.mxu0 0.0
        %2328 = vmatpush1.msra.mxu0 %v2325
        %2329 = vmatprep.subr.mxu0 0.0
        %2330 = vmatpush1.msra.mxu0 0.0
        %2331 = vmatprep.subr.mxu0 0.0
        %2332 = vmatpush1.msra.mxu0 0.0
        %2333 = vmatprep.subr.mxu0 0.0
        %2334 = vmatpush1.msra.mxu0 0.0
        %2335 = vmatprep.subr.mxu0 0.0
        %2336 = vmatpush1.msra.mxu0 0.0
        %2337 = vmatprep.subr.mxu0 0.0
        %2338 = vmatpush1.msra.mxu0 0.0
        %2339 = vmatprep.subr.mxu0 0.0
        %2340 = vmatpush1.msra.mxu0 0.0
        %2341 = vmatprep.subr.mxu0 0.0
        %2342 = vmatpush1.msra.mxu0 0.0
        %2343 = vmatprep.subr.mxu0 0.0
        %2344 = vmatpush1.msra.mxu0 0.0
        %2345 = vmatprep.subr.mxu0 0.0
        %2346 = vmatpush1.msra.mxu0 0.0
        %2347 = vmatprep.subr.mxu0 0.0
        %2348 = vmatpush1.msra.mxu0 0.0
        %2349 = vmatprep.subr.mxu0 0.0
        %2350 = vmatpush1.msra.mxu0 0.0
        %2351 = vmatprep.subr.mxu0 0.0
        %2352 = vmatpush1.msra.mxu0 0.0
        %2353 = vmatprep.subr.mxu0 0.0
        %2354 = vmatpush1.msra.mxu0 0.0
        %2355 = vmatprep.subr.mxu0 0.0
        %2356 = vmatpush1.msra.mxu0 0.0
        %2357 = vmatprep.subr.mxu0 0.0
        %2358 = vmatpush1.msra.mxu0 0.0
        %2359 = vmatprep.subr.mxu0 0.0
        %2360 = vmatpush1.msra.mxu0 0.0
        %2361 = vmatprep.subr.mxu0 0.0
        %2362 = vmatpush1.msra.mxu0 0.0
        %2363 = vmatprep.subr.mxu0 0.0
        %2364 = vmatpush1.msra.mxu0 0.0
        %2365 = vmatprep.subr.mxu0 0.0
        %2366 = vmatpush1.msra.mxu0 0.0
        %2367 = vmatprep.subr.mxu0 0.0
        %2368 = vmatpush1.msra.mxu0 0.0
        %2369 = vmatprep.subr.mxu0 0.0
        %2370 = vmatpush1.msra.mxu0 0.0
        %2371 = vmatprep.subr.mxu0 0.0
        %2372 = vmatpush1.msra.mxu0 0.0
        %2373 = vmatprep.subr.mxu0 0.0
        %2374 = vmatpush1.msra.mxu0 0.0
        %2375 = vmatprep.subr.mxu0 0.0
        %2376 = vmatpush1.msra.mxu0 0.0
        %2377 = vmatprep.subr.mxu0 0.0
        %2378 = vmatpush1.msra.mxu0 0.0
        %2379 = vmatprep.subr.mxu0 0.0
        %2380 = vmatpush1.msra.mxu0 0.0
        %2381 = vmatprep.subr.mxu0 0.0
        %2382 = vmatpush1.msra.mxu0 0.0
        %2383 = vmatprep.subr.mxu0 0.0
        %2384 = vmatpush1.msra.mxu0 0.0
        %2385 = vmatprep.subr.mxu0 0.0
        %2386 = vmatpush1.msra.mxu0 0.0
        %2387 = vmatprep.subr.mxu0 0.0
        %2388 = vmatpush1.msra.mxu0 0.0
        %2389 = vmatprep.subr.mxu0 0.0
        %2390 = vmatpush1.msra.mxu0 0.0
        %2391 = vmatprep.mubr.f32.mxu0 0.0
        %2392 = vmatmul.mubr.f32.gmra.mrb[0].mxu0 %v2322
        %v2393 = vpop.f32.mrb[0].mxu0
        %v2394 = vadd.f32 %v2318, %v2393
        %v2395 = vpop.f32.mrb[0].mxu0
        %2396 = vdwg.mxu0
        %v2397 = vmul.f32 %v1463, 2.0
        %v2398 = vadd.f32 %v2397, %v2394
        %s2399 = scalar_lea.vmem %s5, 1
        %v2400 = vld [vmem:[%s2399] sm:$0x1]
        %v2402 = vlaneseq
        %v2403 = vshrl.u32 %v2402, 7
        %v2404 = vsub.s32 0, %v2403
        %v2405 = vrot.slane %v2400, %v2404
        %v2407 = vadd.f32 %v2398, %v2405
        %s2408 = scalar_lea.vmem %s6, 4
        %v2409 = vld [vmem:[%s2408] sm:$0xf]
        %s2410 = scalar_lea.vmem %s7, 1
        %v2411 = vld [vmem:[%s2410] sm:$0x1]
        %v2413 = vsel %vm359, %v2407, 0
        %v2416 = vsel %vm363, %v2409, 0
        %2418 = vmatprep.subr.mxu0 0.0
        %2419 = vmatpush1.msra.mxu0 %v2416
        %2420 = vmatprep.subr.mxu0 0.0
        %2421 = vmatpush1.msra.mxu0 0.0
        %2422 = vmatprep.subr.mxu0 0.0
        %2423 = vmatpush1.msra.mxu0 0.0
        %2424 = vmatprep.subr.mxu0 0.0
        %2425 = vmatpush1.msra.mxu0 0.0
        %2426 = vmatprep.subr.mxu0 0.0
        %2427 = vmatpush1.msra.mxu0 0.0
        %2428 = vmatprep.subr.mxu0 0.0
        %2429 = vmatpush1.msra.mxu0 0.0
        %2430 = vmatprep.subr.mxu0 0.0
        %2431 = vmatpush1.msra.mxu0 0.0
        %2432 = vmatprep.subr.mxu0 0.0
        %2433 = vmatpush1.msra.mxu0 0.0
        %2434 = vmatprep.subr.mxu0 0.0
        %2435 = vmatpush1.msra.mxu0 0.0
        %2436 = vmatprep.subr.mxu0 0.0
        %2437 = vmatpush1.msra.mxu0 0.0
        %2438 = vmatprep.subr.mxu0 0.0
        %2439 = vmatpush1.msra.mxu0 0.0
        %2440 = vmatprep.subr.mxu0 0.0
        %2441 = vmatpush1.msra.mxu0 0.0
        %2442 = vmatprep.subr.mxu0 0.0
        %2443 = vmatpush1.msra.mxu0 0.0
        %2444 = vmatprep.subr.mxu0 0.0
        %2445 = vmatpush1.msra.mxu0 0.0
        %2446 = vmatprep.subr.mxu0 0.0
        %2447 = vmatpush1.msra.mxu0 0.0
        %2448 = vmatprep.subr.mxu0 0.0
        %2449 = vmatpush1.msra.mxu0 0.0
        %2450 = vmatprep.subr.mxu0 0.0
        %2451 = vmatpush1.msra.mxu0 0.0
        %2452 = vmatprep.subr.mxu0 0.0
        %2453 = vmatpush1.msra.mxu0 0.0
        %2454 = vmatprep.subr.mxu0 0.0
        %2455 = vmatpush1.msra.mxu0 0.0
        %2456 = vmatprep.subr.mxu0 0.0
        %2457 = vmatpush1.msra.mxu0 0.0
        %2458 = vmatprep.subr.mxu0 0.0
        %2459 = vmatpush1.msra.mxu0 0.0
        %2460 = vmatprep.subr.mxu0 0.0
        %2461 = vmatpush1.msra.mxu0 0.0
        %2462 = vmatprep.subr.mxu0 0.0
        %2463 = vmatpush1.msra.mxu0 0.0
        %2464 = vmatprep.subr.mxu0 0.0
        %2465 = vmatpush1.msra.mxu0 0.0
        %2466 = vmatprep.subr.mxu0 0.0
        %2467 = vmatpush1.msra.mxu0 0.0
        %2468 = vmatprep.subr.mxu0 0.0
        %2469 = vmatpush1.msra.mxu0 0.0
        %2470 = vmatprep.subr.mxu0 0.0
        %2471 = vmatpush1.msra.mxu0 0.0
        %2472 = vmatprep.subr.mxu0 0.0
        %2473 = vmatpush1.msra.mxu0 0.0
        %2474 = vmatprep.subr.mxu0 0.0
        %2475 = vmatpush1.msra.mxu0 0.0
        %2476 = vmatprep.subr.mxu0 0.0
        %2477 = vmatpush1.msra.mxu0 0.0
        %2478 = vmatprep.subr.mxu0 0.0
        %2479 = vmatpush1.msra.mxu0 0.0
        %2480 = vmatprep.subr.mxu0 0.0
        %2481 = vmatpush1.msra.mxu0 0.0
        %2482 = vmatprep.mubr.f32.mxu0 0.0
        %2483 = vmatmul.mubr.f32.gmra.mrb[0].mxu0 %v2413
        %v2484 = vpop.f32.mrb[0].mxu0
        %v2485 = vadd.f32 %v2411, %v2484
        %v2486 = vpop.f32.mrb[0].mxu0
        %2487 = vdwg.mxu0
        %v2488 = vmax.f32 %v2485, 0.0
        %s2489 = scalar_lea.vmem %s8, 8
        %v2490 = vld [vmem:[%s2489] sm:$0xff]
        %s2491 = scalar_lea.vmem %s9, 1
        %v2492 = vld [vmem:[%s2491] sm:$0x1]
        %v2494 = vsel %vm663, %v2488, 0
        %2496 = vmatprep.subr.mxu0 0.0
        %2497 = vmatpush1.msra.mxu0 %v2490
        %2498 = vmatprep.subr.mxu0 0.0
        %2499 = vmatpush1.msra.mxu0 0.0
        %2500 = vmatprep.subr.mxu0 0.0
        %2501 = vmatpush1.msra.mxu0 0.0
        %2502 = vmatprep.subr.mxu0 0.0
        %2503 = vmatpush1.msra.mxu0 0.0
        %2504 = vmatprep.subr.mxu0 0.0
        %2505 = vmatpush1.msra.mxu0 0.0
        %2506 = vmatprep.subr.mxu0 0.0
        %2507 = vmatpush1.msra.mxu0 0.0
        %2508 = vmatprep.subr.mxu0 0.0
        %2509 = vmatpush1.msra.mxu0 0.0
        %2510 = vmatprep.subr.mxu0 0.0
        %2511 = vmatpush1.msra.mxu0 0.0
        %2512 = vmatprep.subr.mxu0 0.0
        %2513 = vmatpush1.msra.mxu0 0.0
        %2514 = vmatprep.subr.mxu0 0.0
        %2515 = vmatpush1.msra.mxu0 0.0
        %2516 = vmatprep.subr.mxu0 0.0
        %2517 = vmatpush1.msra.mxu0 0.0
        %2518 = vmatprep.subr.mxu0 0.0
        %2519 = vmatpush1.msra.mxu0 0.0
        %2520 = vmatprep.subr.mxu0 0.0
        %2521 = vmatpush1.msra.mxu0 0.0
        %2522 = vmatprep.subr.mxu0 0.0
        %2523 = vmatpush1.msra.mxu0 0.0
        %2524 = vmatprep.subr.mxu0 0.0
        %2525 = vmatpush1.msra.mxu0 0.0
        %2526 = vmatprep.subr.mxu0 0.0
        %2527 = vmatpush1.msra.mxu0 0.0
        %2528 = vmatprep.subr.mxu0 0.0
        %2529 = vmatpush1.msra.mxu0 0.0
        %2530 = vmatprep.subr.mxu0 0.0
        %2531 = vmatpush1.msra.mxu0 0.0
        %2532 = vmatprep.subr.mxu0 0.0
        %2533 = vmatpush1.msra.mxu0 0.0
        %2534 = vmatprep.subr.mxu0 0.0
        %2535 = vmatpush1.msra.mxu0 0.0
        %2536 = vmatprep.subr.mxu0 0.0
        %2537 = vmatpush1.msra.mxu0 0.0
        %2538 = vmatprep.subr.mxu0 0.0
        %2539 = vmatpush1.msra.mxu0 0.0
        %2540 = vmatprep.subr.mxu0 0.0
        %2541 = vmatpush1.msra.mxu0 0.0
        %2542 = vmatprep.subr.mxu0 0.0
        %2543 = vmatpush1.msra.mxu0 0.0
        %2544 = vmatprep.subr.mxu0 0.0
        %2545 = vmatpush1.msra.mxu0 0.0
        %2546 = vmatprep.subr.mxu0 0.0
        %2547 = vmatpush1.msra.mxu0 0.0
        %2548 = vmatprep.subr.mxu0 0.0
        %2549 = vmatpush1.msra.mxu0 0.0
        %2550 = vmatprep.subr.mxu0 0.0
        %2551 = vmatpush1.msra.mxu0 0.0
        %2552 = vmatprep.subr.mxu0 0.0
        %2553 = vmatpush1.msra.mxu0 0.0
        %2554 = vmatprep.subr.mxu0 0.0
        %2555 = vmatpush1.msra.mxu0 0.0
        %2556 = vmatprep.subr.mxu0 0.0
        %2557 = vmatpush1.msra.mxu0 0.0
        %2558 = vmatprep.subr.mxu0 0.0
        %2559 = vmatpush1.msra.mxu0 0.0
        %2560 = vmatprep.mubr.f32.mxu0 0.0
        %2561 = vmatmul.mubr.f32.gmra.mrb[0].mxu0 %v2494
        %v2562 = vpop.f32.mrb[0].mxu0
        %v2563 = vadd.f32 %v2492, %v2562
        %v2564 = vpop.f32.mrb[0].mxu0
        %2565 = vdwg.mxu0
        %vm2566 = vcmask 24576
        %2567 = vst.msk [vmem:[%s349] sm:$0x1] %vm2566, %v2563
        %s2568 = sand.u32 %s247, 1
        %s2569 = scalar_lea.sflag [#allocation3], %s2568
        %s2570 = sand.u32 %s247, 1
        %s2571 = scalar_lea.vmem [#allocation2], %s2570
        // Predicated region
        $region61: #{tpu_custom_call.1} parent=59 // pred_check
          %p2572 = pneg %p257
        $region62: #{tpu_custom_call.1} parent=59 // pred_check_branch
          %2574 = sbr.rel (%p2572) target = $region64
        $region63: #{tpu_custom_call.1} parent=59 // pred_region
          %s2576 = ssub.s32 16, 16
          %2577 = vsyncadd %s2569, %s2576
          %s2578 = smul.addr %s24, 16
          %s2579 = scalar_lea.hbm %s10, %s2578
          %s2581 = sshll.u32 %s2571, 4
          %s2582 = int_to_ptr.vmem [resolvable:$true] %s2581
          %2584 = dma.vmem_to_hbm [thread:$0]  %s2582, 16, %s2579, %s2569
        $region64: #{tpu_custom_call.1} parent=59 // pred_fallthru
          _
      $region60: #{tpu_custom_call.1} parent=5 // pred_fallthru
        _
      %p2585 = scmp.le.s32.totalorder 2, %s19
      // Predicated region
      $region65: #{tpu_custom_call.1} parent=5 // pred_check
        %p2586 = pneg %p2585
      $region66: #{tpu_custom_call.1} parent=5 // pred_check_branch
        %2588 = sbr.rel (%p2586) target = $region68
      $region67: #{tpu_custom_call.1} parent=5 // pred_region
        %s2589 = ssub.s32 %s19, 2
        // Predicated region
        $region69: #{tpu_custom_call.1} parent=67 // pred_check
          %p2590 = pneg %p263
        $region70: #{tpu_custom_call.1} parent=67 // pred_check_branch
          %2592 = sbr.rel (%p2590) target = $region72
        $region71: #{tpu_custom_call.1} parent=67 // pred_region
          %s2593 = sand.u32 %s248, 1
          %s2594 = scalar_lea.sflag [#allocation3], %s2593
          %s2595 = sand.u32 %s248, 1
          %s2596 = scalar_lea.vmem [#allocation2], %s2595
          %2597 = dma.done %s2594, 16
        $region72: #{tpu_custom_call.1} parent=67 // pred_fallthru
          _
      $region68: #{tpu_custom_call.1} parent=5 // pred_fallthru
        _
    $region6: #{tpu_custom_call.1} parent=1 // loop_footer
      %s23 = sadd.s32 1, %s19
    $region7: #{tpu_custom_call.1} parent=1 // loop_footer_branch
      %18 = sbr.rel target = $region3
    $region8: #{tpu_custom_call.1} parent=1 // loop_exit
      _
    %2598 = vsyncpa [#allocation3], 1
    %s2599 = scalar_lea.sflag [#allocation3], 1
    %2600 = vsyncpa %s2599, 1

</llo_original>
